<compile_context>
chip_gen: v7x
topology: tpu7x:2x2x1
jax: 0.10.0
libtpu: 0.0.40
codegen_flags: <defaults>
</compile_context>

<pallas_src>
from functools import partial

import jax
import jax.numpy as jnp
from jax.experimental import pallas as pl
from jax.experimental.pallas import tpu as pltpu

INPUT_SIZE = 3
HIDDEN_SIZE = 128
OUTPUT_SIZE = 1

_TILE_ALIGN = 512          # lane-tile granularity (4 x 128-lane vregs)
_MAX_TILE = 8192           # keeps per-tile VMEM temporaries <~14 MiB everywhere


def _round_up(x, m):
    return ((x + m - 1) // m) * m


def _pick_batch_tile(batch):
    """Adaptive lane tile.

    - small batches: round up to 512 lanes only (don't burn a padded 1024-wide
      tile on B=200),
    - otherwise aim for >= 2 grid steps so v7x's two TensorCores both get a
      share of the "parallel" batch axis,
    - cap at _MAX_TILE so activations stay comfortably inside scoped VMEM on
      v7x (64 MiB physical) and v5e (16 MiB default scoped, raised below).
    """
    b_pad = _round_up(batch, _TILE_ALIGN)
    if b_pad < 2 * _TILE_ALIGN:
        return b_pad
    half = _round_up(b_pad // 2, 256)
    return min(half, _MAX_TILE)


def _default_use_bf16():
    """bf16 VPU path on v6e / v7x and newer; f32 VPU path on v5e and older."""
    try:
        kind = jax.devices()[0].device_kind.lower()
    except Exception:
        return True
    return not any(g in kind for g in ("v2", "v3", "v4", "v5"))


def mlp_kernel(xT_ref, w1_ref, b1_ref, w2_ref, b2_ref, w3_ref, b3_ref, o_ref,
               *, use_bcast_load, l3_on_mxu):
    # xT_ref: (3, bt)      compute dtype (bf16 on v6e/v7x, f32 on v5e)
    # w1_ref: (128, 3)     compute dtype    (PyTorch (out, in) layout)
    # b1_ref: (128, 1)     compute dtype
    # w2_ref: (128, 128)   bf16             (MXU operand, f32 accumulate)
    # b2_ref: (128, 1)     compute dtype
    # w3_ref: (1, 128) bf16 (MXU head)  or  (128, 1) f32 (VPU head on v5e)
    # b3_ref: (1,)         f32 scalar in SMEM
    # o_ref : (1, bt)      f32 -- lane-dense over the batch
    cdt = w1_ref.dtype

    # ---- Layer 1: Linear(3 -> 128) + ReLU, pure VPU mul-adds --------------
    # (a K=3 MXU pass would be >97% zero padding).
    h = b1_ref[...]                                           # (128, 1)
    for k in range(INPUT_SIZE):
        if use_bcast_load:
            # stride-0 sublane-broadcast load: row k replicated to all 128
            # sublanes through the (otherwise idle) vld slot.
            xk = xT_ref[pl.ds(k, HIDDEN_SIZE, stride=0), :]   # (128, bt)
        else:
            xk = xT_ref[k:k + 1, :]                           # (1, bt)
        h = h + w1_ref[:, k:k + 1] * xk                       # (128, bt)
    h = jnp.maximum(h, 0.0)

    # ---- Layer 2: Linear(128 -> 128) + ReLU, MXU bf16-in / f32-acc --------
    acc = jnp.dot(w2_ref[...], h.astype(jnp.bfloat16),
                  preferred_element_type=jnp.float32)         # (128, bt) f32
    h = jnp.maximum(acc.astype(cdt) + b2_ref[...], 0.0)       # bias/ReLU in cdt

    # ---- Layer 3: Linear(128 -> 1) head ------------------------------------
    if l3_on_mxu:
        # (1, 128) @ (128, bt) on the MXU (it has large slack; frees VPU/XLU).
        o = jnp.dot(w3_ref[...], h, preferred_element_type=jnp.float32)
    else:
        # v5e: VPU multiply + sublane (XLU) reduction in f32.
        o = jnp.sum(h * w3_ref[...], axis=0, keepdims=True)   # (1, bt)
    o_ref[...] = (o + b3_ref[0]).astype(o_ref.dtype)          # lane-dense store


@partial(jax.jit,
         static_argnames=("batch_tile", "use_bf16", "use_bcast_load",
                          "transposed_input"))
def mlp_forward(x, params, *, batch_tile=None, use_bf16=None,
                use_bcast_load=True, transposed_input=False):
    """Forward pass of the 3-layer MLP.

    x: (B, 3) f32 (PyTorch layout), or (3, B) when transposed_input=True.
    params: (w1, b1, w2, b2, w3, b3) in PyTorch nn.Linear layout
            (W: (out, in), b: (out,)).
    Returns (B, 1) f32.
    """
    w1, b1, w2, b2, w3, b3 = params
    if use_bf16 is None:
        use_bf16 = _default_use_bf16()
    cdt = jnp.bfloat16 if use_bf16 else jnp.float32

    # Feature-major (3, B) activations make everything downstream lane-dense.
    # Prefer feeding (3, B) directly (transposed_input=True) so the wrapper
    # spends no extra HBM pass on transpose; otherwise XLA fuses the cast,
    # transpose and pad below into a single copy.
    xT = x if transposed_input else x.T
    B = xT.shape[1]

    if batch_tile is None:
        batch_tile = _pick_batch_tile(B)
    assert batch_tile % 128 == 0, "batch_tile must be a multiple of 128 lanes"
    grid_b = pl.cdiv(B, batch_tile)
    B_pad = grid_b * batch_tile

    xT = jnp.pad(xT.astype(cdt), ((0, 0), (0, B_pad - B)))    # (3, B_pad)

    w1c = w1.astype(cdt)                                      # (128, 3)
    b1c = b1.reshape(HIDDEN_SIZE, 1).astype(cdt)
    w2c = w2.astype(jnp.bfloat16)                             # (128, 128) MXU operand
    b2c = b2.reshape(HIDDEN_SIZE, 1).astype(cdt)
    if use_bf16:   # head on the MXU
        w3c = w3.reshape(OUTPUT_SIZE, HIDDEN_SIZE).astype(jnp.bfloat16)    # (1, 128)
    else:          # head on the VPU (v5e)
        w3c = w3.reshape(OUTPUT_SIZE, HIDDEN_SIZE).T.astype(jnp.float32)   # (128, 1)
    b3c = b3.reshape(OUTPUT_SIZE).astype(jnp.float32)         # (1,) SMEM scalar

    kernel = partial(mlp_kernel, use_bcast_load=use_bcast_load,
                     l3_on_mxu=use_bf16)

    out = pl.pallas_call(
        kernel,
        out_shape=jax.ShapeDtypeStruct((OUTPUT_SIZE, B_pad), jnp.float32),
        grid_spec=pltpu.PrefetchScalarGridSpec(
            num_scalar_prefetch=0,
            grid=(grid_b,),
            in_specs=[
                pl.BlockSpec((INPUT_SIZE, batch_tile), lambda i: (0, i)),    # xT tile
                pl.BlockSpec((HIDDEN_SIZE, INPUT_SIZE), lambda i: (0, 0)),   # w1 (resident)
                pl.BlockSpec((HIDDEN_SIZE, 1), lambda i: (0, 0)),            # b1
                pl.BlockSpec((HIDDEN_SIZE, HIDDEN_SIZE), lambda i: (0, 0)),  # w2 (resident)
                pl.BlockSpec((HIDDEN_SIZE, 1), lambda i: (0, 0)),            # b2
                pl.BlockSpec(w3c.shape, lambda i: (0, 0)),                   # w3 row/col
                pl.BlockSpec(memory_space=pltpu.MemorySpace.SMEM),           # b3 scalar
            ],
            out_specs=pl.BlockSpec((OUTPUT_SIZE, batch_tile), lambda i: (0, i)),
        ),
        compiler_params=pltpu.CompilerParams(
            dimension_semantics=("parallel",),          # megacore: shard batch tiles
            vmem_limit_bytes=32 * 1024 * 1024,          # covers f32 path on v5e at max tile
        ),
    )(xT, w1c, b1c, w2c, b2c, w3c, b3c)

    # (1, B_pad) -> (B, 1), dropping the lane padding.
    return out[0, :B][:, None]


def init_params(key):
    """Deterministic synthetic parameters in PyTorch nn.Linear layout."""
    ks = jax.random.split(key, 6)

    def lin(kw, kb, fan_in, fan_out):
        bound = 1.0 / jnp.sqrt(jnp.asarray(fan_in, jnp.float32))
        w = jax.random.uniform(kw, (fan_out, fan_in), jnp.float32, -bound, bound)
        b = jax.random.uniform(kb, (fan_out,), jnp.float32, -bound, bound)
        return w, b

    w1, b1 = lin(ks[0], ks[1], INPUT_SIZE, HIDDEN_SIZE)
    w2, b2 = lin(ks[2], ks[3], HIDDEN_SIZE, HIDDEN_SIZE)
    w3, b3 = lin(ks[4], ks[5], HIDDEN_SIZE, OUTPUT_SIZE)
    return (w1, b1, w2, b2, w3, b3)


def mlp_reference(x, params):
    w1, b1, w2, b2, w3, b3 = params
    h = jnp.maximum(x @ w1.T + b1, 0.0)
    h = jnp.maximum(h @ w2.T + b2, 0.0)
    return h @ w3.T + b3


def _bcast_load_supported(use_bf16):
    """One-time probe: stride-0 sublane-broadcast loads are the preferred
    layer-1 path; fall back to jnp broadcasting if this Pallas/Mosaic build
    rejects them (compile error) or mis-lowers them (wrong numerics)."""
    try:
        kp, kx = jax.random.split(jax.random.PRNGKey(1))
        params = init_params(kp)
        x = jax.random.normal(kx, (16, INPUT_SIZE), jnp.float32)
        out = jax.block_until_ready(
            mlp_forward(x, params, use_bf16=use_bf16, use_bcast_load=True))
        ref = mlp_reference(x, params)
        return bool(jnp.allclose(out, ref, atol=2e-2, rtol=2e-2))
    except Exception:
        return False


if __name__ == "__main__":
    key = jax.random.PRNGKey(0)
    kx, kp = jax.random.split(key)

    B = 200  # deliberately not a multiple of any tile size (exercises padding)
    x = jax.random.normal(kx, (B, INPUT_SIZE), jnp.float32)
    params = init_params(kp)
    ref = mlp_reference(x, params)

    use_bf16 = _default_use_bf16()
    use_bcast_load = _bcast_load_supported(use_bf16)

    # 1) Default adaptive tile (single 512-wide step for B=200).
    out = jax.block_until_ready(
        mlp_forward(x, params, use_bf16=use_bf16, use_bcast_load=use_bcast_load))
    assert out.shape == (B, OUTPUT_SIZE), out.shape
    # bf16 MXU/VPU paths (f32 accumulation) => loose tolerance vs f32 reference.
    assert jnp.allclose(out, ref, atol=2e-2, rtol=2e-2), "mismatch (auto tile)"

    # 2) Small explicit tile -> multi-step grid (grid=2) + remainder padding.
    out2 = jax.block_until_ready(
        mlp_forward(x, params, batch_tile=128, use_bf16=use_bf16,
                    use_bcast_load=use_bcast_load))
    assert out2.shape == (B, OUTPUT_SIZE), out2.shape
    assert jnp.allclose(out2, ref, atol=2e-2, rtol=2e-2), "mismatch (tile=128)"

    # 3) Feature-major input (3, B): skips the wrapper-side transpose HBM pass.
    out3 = jax.block_until_ready(
        mlp_forward(x.T, params, transposed_input=True, use_bf16=use_bf16,
                    use_bcast_load=use_bcast_load))
    assert jnp.allclose(out3, ref, atol=2e-2, rtol=2e-2), "mismatch (transposed in)"

    print("KERNEL_OK")
</pallas_src>

<mosaic_0001>
module attributes {stable_mosaic.version = 11 : i64} {
  func.func @mlp_kernel(%arg0: i32, %arg1: memref<3x512xbf16, #tpu.memory_space<vmem>>, %arg2: memref<128x3xbf16, #tpu.memory_space<vmem>>, %arg3: memref<128x1xbf16, #tpu.memory_space<vmem>>, %arg4: memref<128x128xbf16, #tpu.memory_space<vmem>>, %arg5: memref<128x1xbf16, #tpu.memory_space<vmem>>, %arg6: memref<1x128xbf16, #tpu.memory_space<vmem>>, %arg7: memref<1xf32, #tpu.memory_space<smem>>, %arg8: memref<1x512xf32, #tpu.memory_space<vmem>>) attributes {dimension_semantics = [#tpu.dimension_semantics<parallel>], iteration_bounds = array<i64: 1>, scalar_prefetch = 0 : i64, scratch_operands = 0 : i64, tpu.core_type = #tpu.core_type<tc>, window_params = [{transform_indices = @transform_0, window_bounds = array<i64: 3, 512>}, {pipeline_mode = #tpu.pipeline_mode<synchronous>, transform_indices = @transform_1, window_bounds = array<i64: 128, 3>}, {pipeline_mode = #tpu.pipeline_mode<synchronous>, transform_indices = @transform_2, window_bounds = array<i64: 128, 1>}, {pipeline_mode = #tpu.pipeline_mode<synchronous>, transform_indices = @transform_3, window_bounds = array<i64: 128, 128>}, {pipeline_mode = #tpu.pipeline_mode<synchronous>, transform_indices = @transform_4, window_bounds = array<i64: 128, 1>}, {pipeline_mode = #tpu.pipeline_mode<synchronous>, transform_indices = @transform_5, window_bounds = array<i64: 1, 128>}, {transform_indices = @transform_6, window_bounds = array<i64: 1>}, {transform_indices = @transform_7, window_bounds = array<i64: 1, 512>}]} {
    %c0 = arith.constant 0 : index
    %c0_0 = arith.constant 0 : index
    %0 = vector.load %arg3[%c0, %c0_0] : memref<128x1xbf16, #tpu.memory_space<vmem>>, vector<128x1xbf16>
    %c0_1 = arith.constant 0 : index
    %c0_2 = arith.constant 0 : index
    %1 = tpu.strided_load %arg1[%c0_1, %c0_2] {strides = array<i32: 0, 1>} : memref<3x512xbf16, #tpu.memory_space<vmem>>, vector<128x512xbf16>
    %c0_3 = arith.constant 0 : index
    %c0_4 = arith.constant 0 : index
    %2 = vector.load %arg2[%c0_3, %c0_4] : memref<128x3xbf16, #tpu.memory_space<vmem>>, vector<128x1xbf16>
    %3 = vector.broadcast %2 : vector<128x1xbf16> to vector<128x512xbf16>
    %4 = arith.mulf %3, %1 : vector<128x512xbf16>
    %5 = vector.broadcast %0 : vector<128x1xbf16> to vector<128x512xbf16>
    %6 = arith.addf %5, %4 : vector<128x512xbf16>
    %c1 = arith.constant 1 : index
    %c0_5 = arith.constant 0 : index
    %7 = tpu.strided_load %arg1[%c1, %c0_5] {strides = array<i32: 0, 1>} : memref<3x512xbf16, #tpu.memory_space<vmem>>, vector<128x512xbf16>
    %c0_6 = arith.constant 0 : index
    %c1_7 = arith.constant 1 : index
    %8 = vector.load %arg2[%c0_6, %c1_7] : memref<128x3xbf16, #tpu.memory_space<vmem>>, vector<128x1xbf16>
    %9 = vector.broadcast %8 : vector<128x1xbf16> to vector<128x512xbf16>
    %10 = arith.mulf %9, %7 : vector<128x512xbf16>
    %11 = arith.addf %6, %10 : vector<128x512xbf16>
    %c2 = arith.constant 2 : index
    %c0_8 = arith.constant 0 : index
    %12 = tpu.strided_load %arg1[%c2, %c0_8] {strides = array<i32: 0, 1>} : memref<3x512xbf16, #tpu.memory_space<vmem>>, vector<128x512xbf16>
    %c0_9 = arith.constant 0 : index
    %c2_10 = arith.constant 2 : index
    %13 = vector.load %arg2[%c0_9, %c2_10] : memref<128x3xbf16, #tpu.memory_space<vmem>>, vector<128x1xbf16>
    %14 = vector.broadcast %13 : vector<128x1xbf16> to vector<128x512xbf16>
    %15 = arith.mulf %14, %12 : vector<128x512xbf16>
    %16 = arith.addf %11, %15 : vector<128x512xbf16>
    %cst = arith.constant 0.000000e+00 : bf16
    %17 = vector.broadcast %cst : bf16 to vector<128x512xbf16>
    %18 = arith.maximumf %16, %17 : vector<128x512xbf16>
    %c0_11 = arith.constant 0 : index
    %c0_12 = arith.constant 0 : index
    %19 = vector.load %arg4[%c0_11, %c0_12] : memref<128x128xbf16, #tpu.memory_space<vmem>>, vector<128x128xbf16>
    %cst_13 = arith.constant dense<0.000000e+00> : vector<128x512xf32>
    %20 = tpu.matmul %19, %18, %cst_13 {dimension_numbers = #tpu.dot_dimension_numbers<[1], [0], [0], [1], [0, 0, 1, 1], [], []>} : vector<128x128xbf16>, vector<128x512xbf16>, vector<128x512xf32> -> vector<128x512xf32>
    %21 = arith.truncf %20 : vector<128x512xf32> to vector<128x512xbf16>
    %c0_14 = arith.constant 0 : index
    %c0_15 = arith.constant 0 : index
    %22 = vector.load %arg5[%c0_14, %c0_15] : memref<128x1xbf16, #tpu.memory_space<vmem>>, vector<128x1xbf16>
    %23 = vector.broadcast %22 : vector<128x1xbf16> to vector<128x512xbf16>
    %24 = arith.addf %21, %23 : vector<128x512xbf16>
    %cst_16 = arith.constant 0.000000e+00 : bf16
    %25 = vector.broadcast %cst_16 : bf16 to vector<128x512xbf16>
    %26 = arith.maximumf %24, %25 : vector<128x512xbf16>
    %c0_17 = arith.constant 0 : index
    %c0_18 = arith.constant 0 : index
    %27 = vector.load %arg6[%c0_17, %c0_18] : memref<1x128xbf16, #tpu.memory_space<vmem>>, vector<1x128xbf16>
    %cst_19 = arith.constant dense<0.000000e+00> : vector<1x512xf32>
    %28 = tpu.matmul %27, %26, %cst_19 {dimension_numbers = #tpu.dot_dimension_numbers<[1], [0], [0], [1], [0, 0, 1, 1], [], []>} : vector<1x128xbf16>, vector<128x512xbf16>, vector<1x512xf32> -> vector<1x512xf32>
    %c0_20 = arith.constant 0 : index
    %29 = memref.load %arg7[%c0_20] : memref<1xf32, #tpu.memory_space<smem>>
    %30 = vector.broadcast %29 : f32 to vector<1x512xf32>
    %31 = arith.addf %28, %30 : vector<1x512xf32>
    %c0_21 = arith.constant 0 : index
    %c0_22 = arith.constant 0 : index
    %32 = vector.load %arg8[%c0_21, %c0_22] : memref<1x512xf32, #tpu.memory_space<vmem>>, vector<1x512xf32>
    tpu.vector_store %arg8[%c0_21, %c0_22], %31 {strides = array<i32>} : memref<1x512xf32, #tpu.memory_space<vmem>>, vector<1x512xf32>,
    return
  }
  func.func @transform_0(%arg0: i32) -> (i32, i32) {
    %c0_i32 = arith.constant 0 : i32
    %c0_i32_0 = arith.constant 0 : i32
    return %c0_i32, %arg0 : i32, i32
  }
  func.func @transform_1(%arg0: i32) -> (i32, i32) {
    %c0_i32 = arith.constant 0 : i32
    %c0_i32_0 = arith.constant 0 : i32
    %c0_i32_1 = arith.constant 0 : i32
    return %c0_i32, %c0_i32_0 : i32, i32
  }
  func.func @transform_2(%arg0: i32) -> (i32, i32) {
    %c0_i32 = arith.constant 0 : i32
    %c0_i32_0 = arith.constant 0 : i32
    %c0_i32_1 = arith.constant 0 : i32
    return %c0_i32, %c0_i32_0 : i32, i32
  }
  func.func @transform_3(%arg0: i32) -> (i32, i32) {
    %c0_i32 = arith.constant 0 : i32
    %c0_i32_0 = arith.constant 0 : i32
    %c0_i32_1 = arith.constant 0 : i32
    return %c0_i32, %c0_i32_0 : i32, i32
  }
  func.func @transform_4(%arg0: i32) -> (i32, i32) {
    %c0_i32 = arith.constant 0 : i32
    %c0_i32_0 = arith.constant 0 : i32
    %c0_i32_1 = arith.constant 0 : i32
    return %c0_i32, %c0_i32_0 : i32, i32
  }
  func.func @transform_5(%arg0: i32) -> (i32, i32) {
    %c0_i32 = arith.constant 0 : i32
    %c0_i32_0 = arith.constant 0 : i32
    %c0_i32_1 = arith.constant 0 : i32
    return %c0_i32, %c0_i32_0 : i32, i32
  }
  func.func @transform_6(%arg0: i32) -> i32 {
    %c0_i32 = arith.constant 0 : i32
    %c0_i32_0 = arith.constant 0 : i32
    return %c0_i32 : i32
  }
  func.func @transform_7(%arg0: i32) -> (i32, i32) {
    %c0_i32 = arith.constant 0 : i32
    %c0_i32_0 = arith.constant 0 : i32
    return %c0_i32, %arg0 : i32, i32
  }
}

module attributes {stable_mosaic.version = 11 : i64} {
  func.func @mlp_kernel(%arg0: i32, %arg1: memref<3x512xbf16, #tpu.memory_space<vmem>>, %arg2: memref<128x3xbf16, #tpu.memory_space<vmem>>, %arg3: memref<128x1xbf16, #tpu.memory_space<vmem>>, %arg4: memref<128x128xbf16, #tpu.memory_space<vmem>>, %arg5: memref<128x1xbf16, #tpu.memory_space<vmem>>, %arg6: memref<1x128xbf16, #tpu.memory_space<vmem>>, %arg7: memref<1xf32, #tpu.memory_space<smem>>, %arg8: memref<1x512xf32, #tpu.memory_space<vmem>>) attributes {dimension_semantics = [#tpu.dimension_semantics<parallel>], iteration_bounds = array<i64: 1>, scalar_prefetch = 0 : i64, scratch_operands = 0 : i64, tpu.core_type = #tpu.core_type<tc>, window_params = [{transform_indices = @transform_0, window_bounds = array<i64: 3, 512>}, {pipeline_mode = #tpu.pipeline_mode<synchronous>, transform_indices = @transform_1, window_bounds = array<i64: 128, 3>}, {pipeline_mode = #tpu.pipeline_mode<synchronous>, transform_indices = @transform_2, window_bounds = array<i64: 128, 1>}, {pipeline_mode = #tpu.pipeline_mode<synchronous>, transform_indices = @transform_3, window_bounds = array<i64: 128, 128>}, {pipeline_mode = #tpu.pipeline_mode<synchronous>, transform_indices = @transform_4, window_bounds = array<i64: 128, 1>}, {pipeline_mode = #tpu.pipeline_mode<synchronous>, transform_indices = @transform_5, window_bounds = array<i64: 1, 128>}, {transform_indices = @transform_6, window_bounds = array<i64: 1>}, {transform_indices = @transform_7, window_bounds = array<i64: 1, 512>}]} {
    %c0 = arith.constant 0 : index
    %c0_0 = arith.constant 0 : index
    %0 = vector.load %arg3[%c0, %c0_0] : memref<128x1xbf16, #tpu.memory_space<vmem>>, vector<128x1xbf16>
    %c0_1 = arith.constant 0 : index
    %c0_2 = arith.constant 0 : index
    %1 = vector.load %arg1[%c0_1, %c0_2] : memref<3x512xbf16, #tpu.memory_space<vmem>>, vector<1x512xbf16>
    %c0_3 = arith.constant 0 : index
    %c0_4 = arith.constant 0 : index
    %2 = vector.load %arg2[%c0_3, %c0_4] : memref<128x3xbf16, #tpu.memory_space<vmem>>, vector<128x1xbf16>
    %3 = vector.broadcast %2 : vector<128x1xbf16> to vector<128x512xbf16>
    %4 = vector.broadcast %1 : vector<1x512xbf16> to vector<128x512xbf16>
    %5 = arith.mulf %3, %4 : vector<128x512xbf16>
    %6 = vector.broadcast %0 : vector<128x1xbf16> to vector<128x512xbf16>
    %7 = arith.addf %6, %5 : vector<128x512xbf16>
    %c1 = arith.constant 1 : index
    %c0_5 = arith.constant 0 : index
    %8 = vector.load %arg1[%c1, %c0_5] : memref<3x512xbf16, #tpu.memory_space<vmem>>, vector<1x512xbf16>
    %c0_6 = arith.constant 0 : index
    %c1_7 = arith.constant 1 : index
    %9 = vector.load %arg2[%c0_6, %c1_7] : memref<128x3xbf16, #tpu.memory_space<vmem>>, vector<128x1xbf16>
    %10 = vector.broadcast %9 : vector<128x1xbf16> to vector<128x512xbf16>
    %11 = vector.broadcast %8 : vector<1x512xbf16> to vector<128x512xbf16>
    %12 = arith.mulf %10, %11 : vector<128x512xbf16>
    %13 = arith.addf %7, %12 : vector<128x512xbf16>
    %c2 = arith.constant 2 : index
    %c0_8 = arith.constant 0 : index
    %14 = vector.load %arg1[%c2, %c0_8] : memref<3x512xbf16, #tpu.memory_space<vmem>>, vector<1x512xbf16>
    %c0_9 = arith.constant 0 : index
    %c2_10 = arith.constant 2 : index
    %15 = vector.load %arg2[%c0_9, %c2_10] : memref<128x3xbf16, #tpu.memory_space<vmem>>, vector<128x1xbf16>
    %16 = vector.broadcast %15 : vector<128x1xbf16> to vector<128x512xbf16>
    %17 = vector.broadcast %14 : vector<1x512xbf16> to vector<128x512xbf16>
    %18 = arith.mulf %16, %17 : vector<128x512xbf16>
    %19 = arith.addf %13, %18 : vector<128x512xbf16>
    %cst = arith.constant 0.000000e+00 : bf16
    %20 = vector.broadcast %cst : bf16 to vector<128x512xbf16>
    %21 = arith.maximumf %19, %20 : vector<128x512xbf16>
    %c0_11 = arith.constant 0 : index
    %c0_12 = arith.constant 0 : index
    %22 = vector.load %arg4[%c0_11, %c0_12] : memref<128x128xbf16, #tpu.memory_space<vmem>>, vector<128x128xbf16>
    %cst_13 = arith.constant dense<0.000000e+00> : vector<128x512xf32>
    %23 = tpu.matmul %22, %21, %cst_13 {dimension_numbers = #tpu.dot_dimension_numbers<[1], [0], [0], [1], [0, 0, 1, 1], [], []>} : vector<128x128xbf16>, vector<128x512xbf16>, vector<128x512xf32> -> vector<128x512xf32>
    %24 = arith.truncf %23 : vector<128x512xf32> to vector<128x512xbf16>
    %c0_14 = arith.constant 0 : index
    %c0_15 = arith.constant 0 : index
    %25 = vector.load %arg5[%c0_14, %c0_15] : memref<128x1xbf16, #tpu.memory_space<vmem>>, vector<128x1xbf16>
    %26 = vector.broadcast %25 : vector<128x1xbf16> to vector<128x512xbf16>
    %27 = arith.addf %24, %26 : vector<128x512xbf16>
    %cst_16 = arith.constant 0.000000e+00 : bf16
    %28 = vector.broadcast %cst_16 : bf16 to vector<128x512xbf16>
    %29 = arith.maximumf %27, %28 : vector<128x512xbf16>
    %c0_17 = arith.constant 0 : index
    %c0_18 = arith.constant 0 : index
    %30 = vector.load %arg6[%c0_17, %c0_18] : memref<1x128xbf16, #tpu.memory_space<vmem>>, vector<1x128xbf16>
    %cst_19 = arith.constant dense<0.000000e+00> : vector<1x512xf32>
    %31 = tpu.matmul %30, %29, %cst_19 {dimension_numbers = #tpu.dot_dimension_numbers<[1], [0], [0], [1], [0, 0, 1, 1], [], []>} : vector<1x128xbf16>, vector<128x512xbf16>, vector<1x512xf32> -> vector<1x512xf32>
    %c0_20 = arith.constant 0 : index
    %32 = memref.load %arg7[%c0_20] : memref<1xf32, #tpu.memory_space<smem>>
    %33 = vector.broadcast %32 : f32 to vector<1x512xf32>
    %34 = arith.addf %31, %33 : vector<1x512xf32>
    %c0_21 = arith.constant 0 : index
    %c0_22 = arith.constant 0 : index
    %35 = vector.load %arg8[%c0_21, %c0_22] : memref<1x512xf32, #tpu.memory_space<vmem>>, vector<1x512xf32>
    tpu.vector_store %arg8[%c0_21, %c0_22], %34 {strides = array<i32>} : memref<1x512xf32, #tpu.memory_space<vmem>>, vector<1x512xf32>,
    return
  }
  func.func @transform_0(%arg0: i32) -> (i32, i32) {
    %c0_i32 = arith.constant 0 : i32
    %c0_i32_0 = arith.constant 0 : i32
    return %c0_i32, %arg0 : i32, i32
  }
  func.func @transform_1(%arg0: i32) -> (i32, i32) {
    %c0_i32 = arith.constant 0 : i32
    %c0_i32_0 = arith.constant 0 : i32
    %c0_i32_1 = arith.constant 0 : i32
    return %c0_i32, %c0_i32_0 : i32, i32
  }
  func.func @transform_2(%arg0: i32) -> (i32, i32) {
    %c0_i32 = arith.constant 0 : i32
    %c0_i32_0 = arith.constant 0 : i32
    %c0_i32_1 = arith.constant 0 : i32
    return %c0_i32, %c0_i32_0 : i32, i32
  }
  func.func @transform_3(%arg0: i32) -> (i32, i32) {
    %c0_i32 = arith.constant 0 : i32
    %c0_i32_0 = arith.constant 0 : i32
    %c0_i32_1 = arith.constant 0 : i32
    return %c0_i32, %c0_i32_0 : i32, i32
  }
  func.func @transform_4(%arg0: i32) -> (i32, i32) {
    %c0_i32 = arith.constant 0 : i32
    %c0_i32_0 = arith.constant 0 : i32
    %c0_i32_1 = arith.constant 0 : i32
    return %c0_i32, %c0_i32_0 : i32, i32
  }
  func.func @transform_5(%arg0: i32) -> (i32, i32) {
    %c0_i32 = arith.constant 0 : i32
    %c0_i32_0 = arith.constant 0 : i32
    %c0_i32_1 = arith.constant 0 : i32
    return %c0_i32, %c0_i32_0 : i32, i32
  }
  func.func @transform_6(%arg0: i32) -> i32 {
    %c0_i32 = arith.constant 0 : i32
    %c0_i32_0 = arith.constant 0 : i32
    return %c0_i32 : i32
  }
  func.func @transform_7(%arg0: i32) -> (i32, i32) {
    %c0_i32 = arith.constant 0 : i32
    %c0_i32_0 = arith.constant 0 : i32
    return %c0_i32, %arg0 : i32, i32
  }
}

</mosaic_0001>

<llo_original>
// kernel: mlp_forward.1
$region0: #{mlp_forward.1}
  #allocation0 [shape = 'u32[]', space=smem, size = 0x4, offset = 0x4, fixed_abs, tag = 'smem constant byte address 0x4 - core index']
  #allocation1 [shape = 'u32[144,128]{1,0:T(1,128)}', space=vmem, size = 0x12000, scoped, tag = 'internal scratch']
  #allocation2 [shape = 'f32[1]{0:T(128)S(6)}', space=smem, size = 0x200, scoped, tag = 'scoped memory for mlp_forward.1']
  %s0 = inlined_call_operand.vmem [shape: bf16[3,512], index: 0, kind: input, shape index: {}]
  %s1 = inlined_call_operand.vmem [shape: bf16[128,3], index: 1, kind: input, shape index: {}]
  %s2 = inlined_call_operand.vmem [shape: bf16[128,1], index: 2, kind: input, shape index: {}]
  %s3 = inlined_call_operand.vmem [shape: bf16[128,128], index: 3, kind: input, shape index: {}]
  %s4 = inlined_call_operand.vmem [shape: bf16[128,1], index: 4, kind: input, shape index: {}]
  %s5 = inlined_call_operand.vmem [shape: bf16[1,128], index: 5, kind: input, shape index: {}]
  %s6 = inlined_call_operand.<no memory space> [shape: f32[1], index: 6, kind: input, shape index: {}]
  %s7 = inlined_call_operand.vmem [shape: f32[1,512], index: 7, kind: output, shape index: {}]
  %s8 = sld [smem:[#allocation0]]
  $region38: #{mlp_forward.1} parent=0
    _
  %s10 = ssub.s32 1, %s8
  %s11 = scalar_select 0, %s10, %s8
  %12 = sst [smem:[#allocation2]] %s6
  // Predicated region
  $region2: #{mlp_forward.1} parent=0 // pred_check
    _
  $region3: #{mlp_forward.1} parent=0 // pred_check_branch
    %14 = sbr.rel (0) target = $region5
  $region4: #{mlp_forward.1} parent=0 // pred_region
    _
  $region5: #{mlp_forward.1} parent=0 // pred_fallthru
    _
  // Predicated region
  $region6: #{mlp_forward.1} parent=0 // pred_check
    _
  $region7: #{mlp_forward.1} parent=0 // pred_check_branch
    %16 = sbr.rel (0) target = $region9
  $region8: #{mlp_forward.1} parent=0 // pred_region
    _
  $region9: #{mlp_forward.1} parent=0 // pred_fallthru
    _
  // Predicated region
  $region10: #{mlp_forward.1} parent=0 // pred_check
    _
  $region11: #{mlp_forward.1} parent=0 // pred_check_branch
    %18 = sbr.rel (0) target = $region13
  $region12: #{mlp_forward.1} parent=0 // pred_region
    _
  $region13: #{mlp_forward.1} parent=0 // pred_fallthru
    _
  // Predicated region
  $region14: #{mlp_forward.1} parent=0 // pred_check
    _
  $region15: #{mlp_forward.1} parent=0 // pred_check_branch
    %20 = sbr.rel (0) target = $region17
  $region16: #{mlp_forward.1} parent=0 // pred_region
    _
  $region17: #{mlp_forward.1} parent=0 // pred_fallthru
    _
  // Predicated region
  $region18: #{mlp_forward.1} parent=0 // pred_check
    _
  $region19: #{mlp_forward.1} parent=0 // pred_check_branch
    %22 = sbr.rel (0) target = $region21
  $region20: #{mlp_forward.1} parent=0 // pred_region
    _
  $region21: #{mlp_forward.1} parent=0 // pred_fallthru
    _
  // Predicated region
  $region22: #{mlp_forward.1} parent=0 // pred_check
    _
  $region23: #{mlp_forward.1} parent=0 // pred_check_branch
    %24 = sbr.rel (0) target = $region25
  $region24: #{mlp_forward.1} parent=0 // pred_region
    _
  $region25: #{mlp_forward.1} parent=0 // pred_fallthru
    _
  // Predicated region
  $region26: #{mlp_forward.1} parent=0 // pred_check
    _
  $region27: #{mlp_forward.1} parent=0 // pred_check_branch
    %26 = sbr.rel (0) target = $region29
  $region28: #{mlp_forward.1} parent=0 // pred_region
    _
  $region29: #{mlp_forward.1} parent=0 // pred_fallthru
    _
  %v28 = vld [vmem:[%s2] sm:$0xf]
  %v29 = vld [vmem:[%s2 + $0x4] sm:$0xf]
  %v30 = vld [vmem:[%s2 + $0x8] sm:$0xf]
  %v31 = vld [vmem:[%s2 + $0xc] sm:$0xf]
  %v32 = vld [vmem:[%s2 + $0x10] sm:$0xf]
  %v33 = vld [vmem:[%s2 + $0x14] sm:$0xf]
  %v34 = vld [vmem:[%s2 + $0x18] sm:$0xf]
  %v35 = vld [vmem:[%s2 + $0x1c] sm:$0xf]
  %v36 = vld [vmem:[%s2 + $0x20] sm:$0xf]
  %v37 = vld [vmem:[%s2 + $0x24] sm:$0xf]
  %v38 = vld [vmem:[%s2 + $0x28] sm:$0xf]
  %v39 = vld [vmem:[%s2 + $0x2c] sm:$0xf]
  %v40 = vld [vmem:[%s2 + $0x30] sm:$0xf]
  %v41 = vld [vmem:[%s2 + $0x34] sm:$0xf]
  %v42 = vld [vmem:[%s2 + $0x38] sm:$0xf]
  %v43 = vld [vmem:[%s2 + $0x3c] sm:$0xf]
  %v44 = vld [vmem:[%s0] sm:$0x55]
  %v45 = vld [vmem:[%s1] sm:$0xf]
  %v46 = vld [vmem:[%s1 + $0x4] sm:$0xf]
  %v47 = vld [vmem:[%s1 + $0x8] sm:$0xf]
  %v48 = vld [vmem:[%s1 + $0xc] sm:$0xf]
  %v49 = vld [vmem:[%s1 + $0x10] sm:$0xf]
  %v50 = vld [vmem:[%s1 + $0x14] sm:$0xf]
  %v51 = vld [vmem:[%s1 + $0x18] sm:$0xf]
  %v52 = vld [vmem:[%s1 + $0x1c] sm:$0xf]
  %v53 = vld [vmem:[%s1 + $0x20] sm:$0xf]
  %v54 = vld [vmem:[%s1 + $0x24] sm:$0xf]
  %v55 = vld [vmem:[%s1 + $0x28] sm:$0xf]
  %v56 = vld [vmem:[%s1 + $0x2c] sm:$0xf]
  %v57 = vld [vmem:[%s1 + $0x30] sm:$0xf]
  %v58 = vld [vmem:[%s1 + $0x34] sm:$0xf]
  %v59 = vld [vmem:[%s1 + $0x38] sm:$0xf]
  %v60 = vld [vmem:[%s1 + $0x3c] sm:$0xf]
  %62 = vset.pattern.permute.xlu0 0
  %63 = vperm.xlu0 %62, %v45
  %v64 = vpop.permute.xlu0 %63
  %v67 = vunpack.c.l.s4 839922192
  %v68 = vunpack.c.0.s8 %v67
  %v69 = vlaneseq
  %v70 = vshrl.u32 %v69, 7
  %v71 = vsub.s32 %v68, %v70
  %v72 = vrot.slane %v64, %v71
  %74 = vset.pattern.permute.xlu0 0
  %75 = vperm.xlu0 %74, %v46
  %v76 = vpop.permute.xlu0 %75
  %v79 = vunpack.c.l.s4 839922192
  %v80 = vunpack.c.0.s8 %v79
  %v81 = vlaneseq
  %v82 = vshrl.u32 %v81, 7
  %v83 = vsub.s32 %v80, %v82
  %v84 = vrot.slane %v76, %v83
  %86 = vset.pattern.permute.xlu0 0
  %87 = vperm.xlu0 %86, %v47
  %v88 = vpop.permute.xlu0 %87
  %v91 = vunpack.c.l.s4 839922192
  %v92 = vunpack.c.0.s8 %v91
  %v93 = vlaneseq
  %v94 = vshrl.u32 %v93, 7
  %v95 = vsub.s32 %v92, %v94
  %v96 = vrot.slane %v88, %v95
  %98 = vset.pattern.permute.xlu0 0
  %99 = vperm.xlu0 %98, %v48
  %v100 = vpop.permute.xlu0 %99
  %v103 = vunpack.c.l.s4 839922192
  %v104 = vunpack.c.0.s8 %v103
  %v105 = vlaneseq
  %v106 = vshrl.u32 %v105, 7
  %v107 = vsub.s32 %v104, %v106
  %v108 = vrot.slane %v100, %v107
  %110 = vset.pattern.permute.xlu0 0
  %111 = vperm.xlu0 %110, %v49
  %v112 = vpop.permute.xlu0 %111
  %v115 = vunpack.c.l.s4 839922192
  %v116 = vunpack.c.0.s8 %v115
  %v117 = vlaneseq
  %v118 = vshrl.u32 %v117, 7
  %v119 = vsub.s32 %v116, %v118
  %v120 = vrot.slane %v112, %v119
  %122 = vset.pattern.permute.xlu0 0
  %123 = vperm.xlu0 %122, %v50
  %v124 = vpop.permute.xlu0 %123
  %v127 = vunpack.c.l.s4 839922192
  %v128 = vunpack.c.0.s8 %v127
  %v129 = vlaneseq
  %v130 = vshrl.u32 %v129, 7
  %v131 = vsub.s32 %v128, %v130
  %v132 = vrot.slane %v124, %v131
  %134 = vset.pattern.permute.xlu0 0
  %135 = vperm.xlu0 %134, %v51
  %v136 = vpop.permute.xlu0 %135
  %v139 = vunpack.c.l.s4 839922192
  %v140 = vunpack.c.0.s8 %v139
  %v141 = vlaneseq
  %v142 = vshrl.u32 %v141, 7
  %v143 = vsub.s32 %v140, %v142
  %v144 = vrot.slane %v136, %v143
  %146 = vset.pattern.permute.xlu0 0
  %147 = vperm.xlu0 %146, %v52
  %v148 = vpop.permute.xlu0 %147
  %v151 = vunpack.c.l.s4 839922192
  %v152 = vunpack.c.0.s8 %v151
  %v153 = vlaneseq
  %v154 = vshrl.u32 %v153, 7
  %v155 = vsub.s32 %v152, %v154
  %v156 = vrot.slane %v148, %v155
  %158 = vset.pattern.permute.xlu0 0
  %159 = vperm.xlu0 %158, %v53
  %v160 = vpop.permute.xlu0 %159
  %v163 = vunpack.c.l.s4 839922192
  %v164 = vunpack.c.0.s8 %v163
  %v165 = vlaneseq
  %v166 = vshrl.u32 %v165, 7
  %v167 = vsub.s32 %v164, %v166
  %v168 = vrot.slane %v160, %v167
  %170 = vset.pattern.permute.xlu0 0
  %171 = vperm.xlu0 %170, %v54
  %v172 = vpop.permute.xlu0 %171
  %v175 = vunpack.c.l.s4 839922192
  %v176 = vunpack.c.0.s8 %v175
  %v177 = vlaneseq
  %v178 = vshrl.u32 %v177, 7
  %v179 = vsub.s32 %v176, %v178
  %v180 = vrot.slane %v172, %v179
  %182 = vset.pattern.permute.xlu0 0
  %183 = vperm.xlu0 %182, %v55
  %v184 = vpop.permute.xlu0 %183
  %v187 = vunpack.c.l.s4 839922192
  %v188 = vunpack.c.0.s8 %v187
  %v189 = vlaneseq
  %v190 = vshrl.u32 %v189, 7
  %v191 = vsub.s32 %v188, %v190
  %v192 = vrot.slane %v184, %v191
  %194 = vset.pattern.permute.xlu0 0
  %195 = vperm.xlu0 %194, %v56
  %v196 = vpop.permute.xlu0 %195
  %v199 = vunpack.c.l.s4 839922192
  %v200 = vunpack.c.0.s8 %v199
  %v201 = vlaneseq
  %v202 = vshrl.u32 %v201, 7
  %v203 = vsub.s32 %v200, %v202
  %v204 = vrot.slane %v196, %v203
  %206 = vset.pattern.permute.xlu0 0
  %207 = vperm.xlu0 %206, %v57
  %v208 = vpop.permute.xlu0 %207
  %v211 = vunpack.c.l.s4 839922192
  %v212 = vunpack.c.0.s8 %v211
  %v213 = vlaneseq
  %v214 = vshrl.u32 %v213, 7
  %v215 = vsub.s32 %v212, %v214
  %v216 = vrot.slane %v208, %v215
  %218 = vset.pattern.permute.xlu0 0
  %219 = vperm.xlu0 %218, %v58
  %v220 = vpop.permute.xlu0 %219
  %v223 = vunpack.c.l.s4 839922192
  %v224 = vunpack.c.0.s8 %v223
  %v225 = vlaneseq
  %v226 = vshrl.u32 %v225, 7
  %v227 = vsub.s32 %v224, %v226
  %v228 = vrot.slane %v220, %v227
  %230 = vset.pattern.permute.xlu0 0
  %231 = vperm.xlu0 %230, %v59
  %v232 = vpop.permute.xlu0 %231
  %v235 = vunpack.c.l.s4 839922192
  %v236 = vunpack.c.0.s8 %v235
  %v237 = vlaneseq
  %v238 = vshrl.u32 %v237, 7
  %v239 = vsub.s32 %v236, %v238
  %v240 = vrot.slane %v232, %v239
  %242 = vset.pattern.permute.xlu0 0
  %243 = vperm.xlu0 %242, %v60
  %v244 = vpop.permute.xlu0 %243
  %v247 = vunpack.c.l.s4 839922192
  %v248 = vunpack.c.0.s8 %v247
  %v249 = vlaneseq
  %v250 = vshrl.u32 %v249, 7
  %v251 = vsub.s32 %v248, %v250
  %v252 = vrot.slane %v244, %v251
  %v254 = vcombine.high %v44, %v44
  %v256 = vunpack.c.l.s4 1983009808
  %v257 = vunpack.c.0.s8 %v256
  %v258 = vlaneseq
  %v259 = vshrl.u32 %v258, 7
  %v260 = vsub.s32 %v257, %v259
  %v261 = vrot.slane %v44, %v260
  %v263 = vunpack.c.l.s4 1983009808
  %v264 = vunpack.c.0.s8 %v263
  %v265 = vlaneseq
  %v266 = vshrl.u32 %v265, 7
  %v267 = vsub.s32 %v264, %v266
  %v268 = vrot.slane %v254, %v267
  %v269 = vcombine.high %v261, %v261
  %v270 = vcombine.high %v268, %v268
  %v272 = vpack.i.b16 %v261, %v261
  %v274 = vlaneseq
  %v275 = vshrl.u32 %v274, 7
  %v276 = vsub.s32 0, %v275
  %v277 = vrot.slane %v272, %v276
  %v279 = vpack.i.b16 %v269, %v269
  %v281 = vlaneseq
  %v282 = vshrl.u32 %v281, 7
  %v283 = vsub.s32 0, %v282
  %v284 = vrot.slane %v279, %v283
  %v286 = vpack.i.b16 %v268, %v268
  %v288 = vlaneseq
  %v289 = vshrl.u32 %v288, 7
  %v290 = vsub.s32 0, %v289
  %v291 = vrot.slane %v286, %v290
  %v293 = vpack.i.b16 %v270, %v270
  %v295 = vlaneseq
  %v296 = vshrl.u32 %v295, 7
  %v297 = vsub.s32 0, %v296
  %v298 = vrot.slane %v293, %v297
  %v303 = vunpack.c.l.b16 %v277
  %v304 = vunpack.c.l.b16 %v284
  %v305 = vunpack.c.l.b16 %v291
  %v306 = vunpack.c.l.b16 %v298
  %v307 = vpack.c.b16 %v304, %v303
  %v308 = vpack.c.b16 %v306, %v305
  %v311 = vmul.bf16 %v72, %v307
  %v312 = vmul.bf16 %v72, %v308
  %v313 = vmul.bf16 %v84, %v307
  %v314 = vmul.bf16 %v84, %v308
  %v315 = vmul.bf16 %v96, %v307
  %v316 = vmul.bf16 %v96, %v308
  %v317 = vmul.bf16 %v108, %v307
  %v318 = vmul.bf16 %v108, %v308
  %v319 = vmul.bf16 %v120, %v307
  %v320 = vmul.bf16 %v120, %v308
  %v321 = vmul.bf16 %v132, %v307
  %v322 = vmul.bf16 %v132, %v308
  %v323 = vmul.bf16 %v144, %v307
  %v324 = vmul.bf16 %v144, %v308
  %v325 = vmul.bf16 %v156, %v307
  %v326 = vmul.bf16 %v156, %v308
  %v327 = vmul.bf16 %v168, %v307
  %v328 = vmul.bf16 %v168, %v308
  %v329 = vmul.bf16 %v180, %v307
  %v330 = vmul.bf16 %v180, %v308
  %v331 = vmul.bf16 %v192, %v307
  %v332 = vmul.bf16 %v192, %v308
  %v333 = vmul.bf16 %v204, %v307
  %v334 = vmul.bf16 %v204, %v308
  %v335 = vmul.bf16 %v216, %v307
  %v336 = vmul.bf16 %v216, %v308
  %v337 = vmul.bf16 %v228, %v307
  %v338 = vmul.bf16 %v228, %v308
  %v339 = vmul.bf16 %v240, %v307
  %v340 = vmul.bf16 %v240, %v308
  %v341 = vmul.bf16 %v252, %v307
  %v342 = vmul.bf16 %v252, %v308
  %344 = vset.pattern.permute.xlu0 0
  %345 = vperm.xlu0 %344, %v28
  %v346 = vpop.permute.xlu0 %345
  %v349 = vunpack.c.l.s4 839922192
  %v350 = vunpack.c.0.s8 %v349
  %v351 = vlaneseq
  %v352 = vshrl.u32 %v351, 7
  %v353 = vsub.s32 %v350, %v352
  %v354 = vrot.slane %v346, %v353
  %356 = vset.pattern.permute.xlu0 0
  %357 = vperm.xlu0 %356, %v29
  %v358 = vpop.permute.xlu0 %357
  %v361 = vunpack.c.l.s4 839922192
  %v362 = vunpack.c.0.s8 %v361
  %v363 = vlaneseq
  %v364 = vshrl.u32 %v363, 7
  %v365 = vsub.s32 %v362, %v364
  %v366 = vrot.slane %v358, %v365
  %368 = vset.pattern.permute.xlu0 0
  %369 = vperm.xlu0 %368, %v30
  %v370 = vpop.permute.xlu0 %369
  %v373 = vunpack.c.l.s4 839922192
  %v374 = vunpack.c.0.s8 %v373
  %v375 = vlaneseq
  %v376 = vshrl.u32 %v375, 7
  %v377 = vsub.s32 %v374, %v376
  %v378 = vrot.slane %v370, %v377
  %380 = vset.pattern.permute.xlu0 0
  %381 = vperm.xlu0 %380, %v31
  %v382 = vpop.permute.xlu0 %381
  %v385 = vunpack.c.l.s4 839922192
  %v386 = vunpack.c.0.s8 %v385
  %v387 = vlaneseq
  %v388 = vshrl.u32 %v387, 7
  %v389 = vsub.s32 %v386, %v388
  %v390 = vrot.slane %v382, %v389
  %392 = vset.pattern.permute.xlu0 0
  %393 = vperm.xlu0 %392, %v32
  %v394 = vpop.permute.xlu0 %393
  %v397 = vunpack.c.l.s4 839922192
  %v398 = vunpack.c.0.s8 %v397
  %v399 = vlaneseq
  %v400 = vshrl.u32 %v399, 7
  %v401 = vsub.s32 %v398, %v400
  %v402 = vrot.slane %v394, %v401
  %404 = vset.pattern.permute.xlu0 0
  %405 = vperm.xlu0 %404, %v33
  %v406 = vpop.permute.xlu0 %405
  %v409 = vunpack.c.l.s4 839922192
  %v410 = vunpack.c.0.s8 %v409
  %v411 = vlaneseq
  %v412 = vshrl.u32 %v411, 7
  %v413 = vsub.s32 %v410, %v412
  %v414 = vrot.slane %v406, %v413
  %416 = vset.pattern.permute.xlu0 0
  %417 = vperm.xlu0 %416, %v34
  %v418 = vpop.permute.xlu0 %417
  %v421 = vunpack.c.l.s4 839922192
  %v422 = vunpack.c.0.s8 %v421
  %v423 = vlaneseq
  %v424 = vshrl.u32 %v423, 7
  %v425 = vsub.s32 %v422, %v424
  %v426 = vrot.slane %v418, %v425
  %428 = vset.pattern.permute.xlu0 0
  %429 = vperm.xlu0 %428, %v35
  %v430 = vpop.permute.xlu0 %429
  %v433 = vunpack.c.l.s4 839922192
  %v434 = vunpack.c.0.s8 %v433
  %v435 = vlaneseq
  %v436 = vshrl.u32 %v435, 7
  %v437 = vsub.s32 %v434, %v436
  %v438 = vrot.slane %v430, %v437
  %440 = vset.pattern.permute.xlu0 0
  %441 = vperm.xlu0 %440, %v36
  %v442 = vpop.permute.xlu0 %441
  %v445 = vunpack.c.l.s4 839922192
  %v446 = vunpack.c.0.s8 %v445
  %v447 = vlaneseq
  %v448 = vshrl.u32 %v447, 7
  %v449 = vsub.s32 %v446, %v448
  %v450 = vrot.slane %v442, %v449
  %452 = vset.pattern.permute.xlu0 0
  %453 = vperm.xlu0 %452, %v37
  %v454 = vpop.permute.xlu0 %453
  %v457 = vunpack.c.l.s4 839922192
  %v458 = vunpack.c.0.s8 %v457
  %v459 = vlaneseq
  %v460 = vshrl.u32 %v459, 7
  %v461 = vsub.s32 %v458, %v460
  %v462 = vrot.slane %v454, %v461
  %464 = vset.pattern.permute.xlu0 0
  %465 = vperm.xlu0 %464, %v38
  %v466 = vpop.permute.xlu0 %465
  %v469 = vunpack.c.l.s4 839922192
  %v470 = vunpack.c.0.s8 %v469
  %v471 = vlaneseq
  %v472 = vshrl.u32 %v471, 7
  %v473 = vsub.s32 %v470, %v472
  %v474 = vrot.slane %v466, %v473
  %476 = vset.pattern.permute.xlu0 0
  %477 = vperm.xlu0 %476, %v39
  %v478 = vpop.permute.xlu0 %477
  %v481 = vunpack.c.l.s4 839922192
  %v482 = vunpack.c.0.s8 %v481
  %v483 = vlaneseq
  %v484 = vshrl.u32 %v483, 7
  %v485 = vsub.s32 %v482, %v484
  %v486 = vrot.slane %v478, %v485
  %488 = vset.pattern.permute.xlu0 0
  %489 = vperm.xlu0 %488, %v40
  %v490 = vpop.permute.xlu0 %489
  %v493 = vunpack.c.l.s4 839922192
  %v494 = vunpack.c.0.s8 %v493
  %v495 = vlaneseq
  %v496 = vshrl.u32 %v495, 7
  %v497 = vsub.s32 %v494, %v496
  %v498 = vrot.slane %v490, %v497
  %500 = vset.pattern.permute.xlu0 0
  %501 = vperm.xlu0 %500, %v41
  %v502 = vpop.permute.xlu0 %501
  %v505 = vunpack.c.l.s4 839922192
  %v506 = vunpack.c.0.s8 %v505
  %v507 = vlaneseq
  %v508 = vshrl.u32 %v507, 7
  %v509 = vsub.s32 %v506, %v508
  %v510 = vrot.slane %v502, %v509
  %512 = vset.pattern.permute.xlu0 0
  %513 = vperm.xlu0 %512, %v42
  %v514 = vpop.permute.xlu0 %513
  %v517 = vunpack.c.l.s4 839922192
  %v518 = vunpack.c.0.s8 %v517
  %v519 = vlaneseq
  %v520 = vshrl.u32 %v519, 7
  %v521 = vsub.s32 %v518, %v520
  %v522 = vrot.slane %v514, %v521
  %524 = vset.pattern.permute.xlu0 0
  %525 = vperm.xlu0 %524, %v43
  %v526 = vpop.permute.xlu0 %525
  %v529 = vunpack.c.l.s4 839922192
  %v530 = vunpack.c.0.s8 %v529
  %v531 = vlaneseq
  %v532 = vshrl.u32 %v531, 7
  %v533 = vsub.s32 %v530, %v532
  %v534 = vrot.slane %v526, %v533
  %v535 = vadd.bf16 %v354, %v311
  %v536 = vadd.bf16 %v354, %v312
  %v537 = vadd.bf16 %v366, %v313
  %v538 = vadd.bf16 %v366, %v314
  %v539 = vadd.bf16 %v378, %v315
  %v540 = vadd.bf16 %v378, %v316
  %v541 = vadd.bf16 %v390, %v317
  %v542 = vadd.bf16 %v390, %v318
  %v543 = vadd.bf16 %v402, %v319
  %v544 = vadd.bf16 %v402, %v320
  %v545 = vadd.bf16 %v414, %v321
  %v546 = vadd.bf16 %v414, %v322
  %v547 = vadd.bf16 %v426, %v323
  %v548 = vadd.bf16 %v426, %v324
  %v549 = vadd.bf16 %v438, %v325
  %v550 = vadd.bf16 %v438, %v326
  %v551 = vadd.bf16 %v450, %v327
  %v552 = vadd.bf16 %v450, %v328
  %v553 = vadd.bf16 %v462, %v329
  %v554 = vadd.bf16 %v462, %v330
  %v555 = vadd.bf16 %v474, %v331
  %v556 = vadd.bf16 %v474, %v332
  %v557 = vadd.bf16 %v486, %v333
  %v558 = vadd.bf16 %v486, %v334
  %v559 = vadd.bf16 %v498, %v335
  %v560 = vadd.bf16 %v498, %v336
  %v561 = vadd.bf16 %v510, %v337
  %v562 = vadd.bf16 %v510, %v338
  %v563 = vadd.bf16 %v522, %v339
  %v564 = vadd.bf16 %v522, %v340
  %v565 = vadd.bf16 %v534, %v341
  %v566 = vadd.bf16 %v534, %v342
  %v567 = vld [vmem:[%s0] sm:$0x55]
  %v568 = vld [vmem:[%s1] sm:$0xf]
  %v569 = vld [vmem:[%s1 + $0x4] sm:$0xf]
  %v570 = vld [vmem:[%s1 + $0x8] sm:$0xf]
  %v571 = vld [vmem:[%s1 + $0xc] sm:$0xf]
  %v572 = vld [vmem:[%s1 + $0x10] sm:$0xf]
  %v573 = vld [vmem:[%s1 + $0x14] sm:$0xf]
  %v574 = vld [vmem:[%s1 + $0x18] sm:$0xf]
  %v575 = vld [vmem:[%s1 + $0x1c] sm:$0xf]
  %v576 = vld [vmem:[%s1 + $0x20] sm:$0xf]
  %v577 = vld [vmem:[%s1 + $0x24] sm:$0xf]
  %v578 = vld [vmem:[%s1 + $0x28] sm:$0xf]
  %v579 = vld [vmem:[%s1 + $0x2c] sm:$0xf]
  %v580 = vld [vmem:[%s1 + $0x30] sm:$0xf]
  %v581 = vld [vmem:[%s1 + $0x34] sm:$0xf]
  %v582 = vld [vmem:[%s1 + $0x38] sm:$0xf]
  %v583 = vld [vmem:[%s1 + $0x3c] sm:$0xf]
  %585 = vset.pattern.permute.xlu0 1
  %586 = vperm.xlu0 %585, %v568
  %v587 = vpop.permute.xlu0 %586
  %v590 = vunpack.c.l.s4 839922192
  %v591 = vunpack.c.0.s8 %v590
  %v592 = vlaneseq
  %v593 = vshrl.u32 %v592, 7
  %v594 = vsub.s32 %v591, %v593
  %v595 = vrot.slane %v587, %v594
  %597 = vset.pattern.permute.xlu0 1
  %598 = vperm.xlu0 %597, %v569
  %v599 = vpop.permute.xlu0 %598
  %v602 = vunpack.c.l.s4 839922192
  %v603 = vunpack.c.0.s8 %v602
  %v604 = vlaneseq
  %v605 = vshrl.u32 %v604, 7
  %v606 = vsub.s32 %v603, %v605
  %v607 = vrot.slane %v599, %v606
  %609 = vset.pattern.permute.xlu0 1
  %610 = vperm.xlu0 %609, %v570
  %v611 = vpop.permute.xlu0 %610
  %v614 = vunpack.c.l.s4 839922192
  %v615 = vunpack.c.0.s8 %v614
  %v616 = vlaneseq
  %v617 = vshrl.u32 %v616, 7
  %v618 = vsub.s32 %v615, %v617
  %v619 = vrot.slane %v611, %v618
  %621 = vset.pattern.permute.xlu0 1
  %622 = vperm.xlu0 %621, %v571
  %v623 = vpop.permute.xlu0 %622
  %v626 = vunpack.c.l.s4 839922192
  %v627 = vunpack.c.0.s8 %v626
  %v628 = vlaneseq
  %v629 = vshrl.u32 %v628, 7
  %v630 = vsub.s32 %v627, %v629
  %v631 = vrot.slane %v623, %v630
  %633 = vset.pattern.permute.xlu0 1
  %634 = vperm.xlu0 %633, %v572
  %v635 = vpop.permute.xlu0 %634
  %v638 = vunpack.c.l.s4 839922192
  %v639 = vunpack.c.0.s8 %v638
  %v640 = vlaneseq
  %v641 = vshrl.u32 %v640, 7
  %v642 = vsub.s32 %v639, %v641
  %v643 = vrot.slane %v635, %v642
  %645 = vset.pattern.permute.xlu0 1
  %646 = vperm.xlu0 %645, %v573
  %v647 = vpop.permute.xlu0 %646
  %v650 = vunpack.c.l.s4 839922192
  %v651 = vunpack.c.0.s8 %v650
  %v652 = vlaneseq
  %v653 = vshrl.u32 %v652, 7
  %v654 = vsub.s32 %v651, %v653
  %v655 = vrot.slane %v647, %v654
  %657 = vset.pattern.permute.xlu0 1
  %658 = vperm.xlu0 %657, %v574
  %v659 = vpop.permute.xlu0 %658
  %v662 = vunpack.c.l.s4 839922192
  %v663 = vunpack.c.0.s8 %v662
  %v664 = vlaneseq
  %v665 = vshrl.u32 %v664, 7
  %v666 = vsub.s32 %v663, %v665
  %v667 = vrot.slane %v659, %v666
  %669 = vset.pattern.permute.xlu0 1
  %670 = vperm.xlu0 %669, %v575
  %v671 = vpop.permute.xlu0 %670
  %v674 = vunpack.c.l.s4 839922192
  %v675 = vunpack.c.0.s8 %v674
  %v676 = vlaneseq
  %v677 = vshrl.u32 %v676, 7
  %v678 = vsub.s32 %v675, %v677
  %v679 = vrot.slane %v671, %v678
  %681 = vset.pattern.permute.xlu0 1
  %682 = vperm.xlu0 %681, %v576
  %v683 = vpop.permute.xlu0 %682
  %v686 = vunpack.c.l.s4 839922192
  %v687 = vunpack.c.0.s8 %v686
  %v688 = vlaneseq
  %v689 = vshrl.u32 %v688, 7
  %v690 = vsub.s32 %v687, %v689
  %v691 = vrot.slane %v683, %v690
  %693 = vset.pattern.permute.xlu0 1
  %694 = vperm.xlu0 %693, %v577
  %v695 = vpop.permute.xlu0 %694
  %v698 = vunpack.c.l.s4 839922192
  %v699 = vunpack.c.0.s8 %v698
  %v700 = vlaneseq
  %v701 = vshrl.u32 %v700, 7
  %v702 = vsub.s32 %v699, %v701
  %v703 = vrot.slane %v695, %v702
  %705 = vset.pattern.permute.xlu0 1
  %706 = vperm.xlu0 %705, %v578
  %v707 = vpop.permute.xlu0 %706
  %v710 = vunpack.c.l.s4 839922192
  %v711 = vunpack.c.0.s8 %v710
  %v712 = vlaneseq
  %v713 = vshrl.u32 %v712, 7
  %v714 = vsub.s32 %v711, %v713
  %v715 = vrot.slane %v707, %v714
  %717 = vset.pattern.permute.xlu0 1
  %718 = vperm.xlu0 %717, %v579
  %v719 = vpop.permute.xlu0 %718
  %v722 = vunpack.c.l.s4 839922192
  %v723 = vunpack.c.0.s8 %v722
  %v724 = vlaneseq
  %v725 = vshrl.u32 %v724, 7
  %v726 = vsub.s32 %v723, %v725
  %v727 = vrot.slane %v719, %v726
  %729 = vset.pattern.permute.xlu0 1
  %730 = vperm.xlu0 %729, %v580
  %v731 = vpop.permute.xlu0 %730
  %v734 = vunpack.c.l.s4 839922192
  %v735 = vunpack.c.0.s8 %v734
  %v736 = vlaneseq
  %v737 = vshrl.u32 %v736, 7
  %v738 = vsub.s32 %v735, %v737
  %v739 = vrot.slane %v731, %v738
  %741 = vset.pattern.permute.xlu0 1
  %742 = vperm.xlu0 %741, %v581
  %v743 = vpop.permute.xlu0 %742
  %v746 = vunpack.c.l.s4 839922192
  %v747 = vunpack.c.0.s8 %v746
  %v748 = vlaneseq
  %v749 = vshrl.u32 %v748, 7
  %v750 = vsub.s32 %v747, %v749
  %v751 = vrot.slane %v743, %v750
  %753 = vset.pattern.permute.xlu0 1
  %754 = vperm.xlu0 %753, %v582
  %v755 = vpop.permute.xlu0 %754
  %v758 = vunpack.c.l.s4 839922192
  %v759 = vunpack.c.0.s8 %v758
  %v760 = vlaneseq
  %v761 = vshrl.u32 %v760, 7
  %v762 = vsub.s32 %v759, %v761
  %v763 = vrot.slane %v755, %v762
  %765 = vset.pattern.permute.xlu0 1
  %766 = vperm.xlu0 %765, %v583
  %v767 = vpop.permute.xlu0 %766
  %v770 = vunpack.c.l.s4 839922192
  %v771 = vunpack.c.0.s8 %v770
  %v772 = vlaneseq
  %v773 = vshrl.u32 %v772, 7
  %v774 = vsub.s32 %v771, %v773
  %v775 = vrot.slane %v767, %v774
  %v777 = vcombine.high %v567, %v567
  %v779 = vunpack.c.l.s4 1983009808
  %v780 = vunpack.c.0.s8 %v779
  %v781 = vlaneseq
  %v782 = vshrl.u32 %v781, 7
  %v783 = vsub.s32 %v780, %v782
  %v784 = vrot.slane %v567, %v783
  %v786 = vunpack.c.l.s4 1983009808
  %v787 = vunpack.c.0.s8 %v786
  %v788 = vlaneseq
  %v789 = vshrl.u32 %v788, 7
  %v790 = vsub.s32 %v787, %v789
  %v791 = vrot.slane %v777, %v790
  %v792 = vcombine.high %v784, %v784
  %v793 = vcombine.high %v791, %v791
  %v795 = vshrl.u32 %v784, 16
  %v796 = vpack.i.b16 %v795, %v795
  %v798 = vlaneseq
  %v799 = vshrl.u32 %v798, 7
  %v800 = vsub.s32 0, %v799
  %v801 = vrot.slane %v796, %v800
  %v803 = vshrl.u32 %v792, 16
  %v804 = vpack.i.b16 %v803, %v803
  %v806 = vlaneseq
  %v807 = vshrl.u32 %v806, 7
  %v808 = vsub.s32 0, %v807
  %v809 = vrot.slane %v804, %v808
  %v811 = vshrl.u32 %v791, 16
  %v812 = vpack.i.b16 %v811, %v811
  %v814 = vlaneseq
  %v815 = vshrl.u32 %v814, 7
  %v816 = vsub.s32 0, %v815
  %v817 = vrot.slane %v812, %v816
  %v819 = vshrl.u32 %v793, 16
  %v820 = vpack.i.b16 %v819, %v819
  %v822 = vlaneseq
  %v823 = vshrl.u32 %v822, 7
  %v824 = vsub.s32 0, %v823
  %v825 = vrot.slane %v820, %v824
  %v830 = vunpack.c.l.b16 %v801
  %v831 = vunpack.c.l.b16 %v809
  %v832 = vunpack.c.l.b16 %v817
  %v833 = vunpack.c.l.b16 %v825
  %v834 = vpack.c.b16 %v831, %v830
  %v835 = vpack.c.b16 %v833, %v832
  %v838 = vmul.bf16 %v595, %v834
  %v839 = vmul.bf16 %v595, %v835
  %v840 = vmul.bf16 %v607, %v834
  %v841 = vmul.bf16 %v607, %v835
  %v842 = vmul.bf16 %v619, %v834
  %v843 = vmul.bf16 %v619, %v835
  %v844 = vmul.bf16 %v631, %v834
  %v845 = vmul.bf16 %v631, %v835
  %v846 = vmul.bf16 %v643, %v834
  %v847 = vmul.bf16 %v643, %v835
  %v848 = vmul.bf16 %v655, %v834
  %v849 = vmul.bf16 %v655, %v835
  %v850 = vmul.bf16 %v667, %v834
  %v851 = vmul.bf16 %v667, %v835
  %v852 = vmul.bf16 %v679, %v834
  %v853 = vmul.bf16 %v679, %v835
  %v854 = vmul.bf16 %v691, %v834
  %v855 = vmul.bf16 %v691, %v835
  %v856 = vmul.bf16 %v703, %v834
  %v857 = vmul.bf16 %v703, %v835
  %v858 = vmul.bf16 %v715, %v834
  %v859 = vmul.bf16 %v715, %v835
  %v860 = vmul.bf16 %v727, %v834
  %v861 = vmul.bf16 %v727, %v835
  %v862 = vmul.bf16 %v739, %v834
  %v863 = vmul.bf16 %v739, %v835
  %v864 = vmul.bf16 %v751, %v834
  %v865 = vmul.bf16 %v751, %v835
  %v866 = vmul.bf16 %v763, %v834
  %v867 = vmul.bf16 %v763, %v835
  %v868 = vmul.bf16 %v775, %v834
  %v869 = vmul.bf16 %v775, %v835
  %v870 = vadd.bf16 %v535, %v838
  %v871 = vadd.bf16 %v536, %v839
  %v872 = vadd.bf16 %v537, %v840
  %v873 = vadd.bf16 %v538, %v841
  %v874 = vadd.bf16 %v539, %v842
  %v875 = vadd.bf16 %v540, %v843
  %v876 = vadd.bf16 %v541, %v844
  %v877 = vadd.bf16 %v542, %v845
  %v878 = vadd.bf16 %v543, %v846
  %v879 = vadd.bf16 %v544, %v847
  %v880 = vadd.bf16 %v545, %v848
  %v881 = vadd.bf16 %v546, %v849
  %v882 = vadd.bf16 %v547, %v850
  %v883 = vadd.bf16 %v548, %v851
  %v884 = vadd.bf16 %v549, %v852
  %v885 = vadd.bf16 %v550, %v853
  %v886 = vadd.bf16 %v551, %v854
  %v887 = vadd.bf16 %v552, %v855
  %v888 = vadd.bf16 %v553, %v856
  %v889 = vadd.bf16 %v554, %v857
  %v890 = vadd.bf16 %v555, %v858
  %v891 = vadd.bf16 %v556, %v859
  %v892 = vadd.bf16 %v557, %v860
  %v893 = vadd.bf16 %v558, %v861
  %v894 = vadd.bf16 %v559, %v862
  %v895 = vadd.bf16 %v560, %v863
  %v896 = vadd.bf16 %v561, %v864
  %v897 = vadd.bf16 %v562, %v865
  %v898 = vadd.bf16 %v563, %v866
  %v899 = vadd.bf16 %v564, %v867
  %v900 = vadd.bf16 %v565, %v868
  %v901 = vadd.bf16 %v566, %v869
  %v902 = vld [vmem:[%s0] sm:$0xaa]
  %v903 = vld [vmem:[%s1] sm:$0xf]
  %v904 = vld [vmem:[%s1 + $0x4] sm:$0xf]
  %v905 = vld [vmem:[%s1 + $0x8] sm:$0xf]
  %v906 = vld [vmem:[%s1 + $0xc] sm:$0xf]
  %v907 = vld [vmem:[%s1 + $0x10] sm:$0xf]
  %v908 = vld [vmem:[%s1 + $0x14] sm:$0xf]
  %v909 = vld [vmem:[%s1 + $0x18] sm:$0xf]
  %v910 = vld [vmem:[%s1 + $0x1c] sm:$0xf]
  %v911 = vld [vmem:[%s1 + $0x20] sm:$0xf]
  %v912 = vld [vmem:[%s1 + $0x24] sm:$0xf]
  %v913 = vld [vmem:[%s1 + $0x28] sm:$0xf]
  %v914 = vld [vmem:[%s1 + $0x2c] sm:$0xf]
  %v915 = vld [vmem:[%s1 + $0x30] sm:$0xf]
  %v916 = vld [vmem:[%s1 + $0x34] sm:$0xf]
  %v917 = vld [vmem:[%s1 + $0x38] sm:$0xf]
  %v918 = vld [vmem:[%s1 + $0x3c] sm:$0xf]
  %920 = vset.pattern.permute.xlu0 2
  %921 = vperm.xlu0 %920, %v903
  %v922 = vpop.permute.xlu0 %921
  %v925 = vunpack.c.l.s4 839922192
  %v926 = vunpack.c.0.s8 %v925
  %v927 = vlaneseq
  %v928 = vshrl.u32 %v927, 7
  %v929 = vsub.s32 %v926, %v928
  %v930 = vrot.slane %v922, %v929
  %932 = vset.pattern.permute.xlu0 2
  %933 = vperm.xlu0 %932, %v904
  %v934 = vpop.permute.xlu0 %933
  %v937 = vunpack.c.l.s4 839922192
  %v938 = vunpack.c.0.s8 %v937
  %v939 = vlaneseq
  %v940 = vshrl.u32 %v939, 7
  %v941 = vsub.s32 %v938, %v940
  %v942 = vrot.slane %v934, %v941
  %944 = vset.pattern.permute.xlu0 2
  %945 = vperm.xlu0 %944, %v905
  %v946 = vpop.permute.xlu0 %945
  %v949 = vunpack.c.l.s4 839922192
  %v950 = vunpack.c.0.s8 %v949
  %v951 = vlaneseq
  %v952 = vshrl.u32 %v951, 7
  %v953 = vsub.s32 %v950, %v952
  %v954 = vrot.slane %v946, %v953
  %956 = vset.pattern.permute.xlu0 2
  %957 = vperm.xlu0 %956, %v906
  %v958 = vpop.permute.xlu0 %957
  %v961 = vunpack.c.l.s4 839922192
  %v962 = vunpack.c.0.s8 %v961
  %v963 = vlaneseq
  %v964 = vshrl.u32 %v963, 7
  %v965 = vsub.s32 %v962, %v964
  %v966 = vrot.slane %v958, %v965
  %968 = vset.pattern.permute.xlu0 2
  %969 = vperm.xlu0 %968, %v907
  %v970 = vpop.permute.xlu0 %969
  %v973 = vunpack.c.l.s4 839922192
  %v974 = vunpack.c.0.s8 %v973
  %v975 = vlaneseq
  %v976 = vshrl.u32 %v975, 7
  %v977 = vsub.s32 %v974, %v976
  %v978 = vrot.slane %v970, %v977
  %980 = vset.pattern.permute.xlu0 2
  %981 = vperm.xlu0 %980, %v908
  %v982 = vpop.permute.xlu0 %981
  %v985 = vunpack.c.l.s4 839922192
  %v986 = vunpack.c.0.s8 %v985
  %v987 = vlaneseq
  %v988 = vshrl.u32 %v987, 7
  %v989 = vsub.s32 %v986, %v988
  %v990 = vrot.slane %v982, %v989
  %992 = vset.pattern.permute.xlu0 2
  %993 = vperm.xlu0 %992, %v909
  %v994 = vpop.permute.xlu0 %993
  %v997 = vunpack.c.l.s4 839922192
  %v998 = vunpack.c.0.s8 %v997
  %v999 = vlaneseq
  %v1000 = vshrl.u32 %v999, 7
  %v1001 = vsub.s32 %v998, %v1000
  %v1002 = vrot.slane %v994, %v1001
  %1004 = vset.pattern.permute.xlu0 2
  %1005 = vperm.xlu0 %1004, %v910
  %v1006 = vpop.permute.xlu0 %1005
  %v1009 = vunpack.c.l.s4 839922192
  %v1010 = vunpack.c.0.s8 %v1009
  %v1011 = vlaneseq
  %v1012 = vshrl.u32 %v1011, 7
  %v1013 = vsub.s32 %v1010, %v1012
  %v1014 = vrot.slane %v1006, %v1013
  %1016 = vset.pattern.permute.xlu0 2
  %1017 = vperm.xlu0 %1016, %v911
  %v1018 = vpop.permute.xlu0 %1017
  %v1021 = vunpack.c.l.s4 839922192
  %v1022 = vunpack.c.0.s8 %v1021
  %v1023 = vlaneseq
  %v1024 = vshrl.u32 %v1023, 7
  %v1025 = vsub.s32 %v1022, %v1024
  %v1026 = vrot.slane %v1018, %v1025
  %1028 = vset.pattern.permute.xlu0 2
  %1029 = vperm.xlu0 %1028, %v912
  %v1030 = vpop.permute.xlu0 %1029
  %v1033 = vunpack.c.l.s4 839922192
  %v1034 = vunpack.c.0.s8 %v1033
  %v1035 = vlaneseq
  %v1036 = vshrl.u32 %v1035, 7
  %v1037 = vsub.s32 %v1034, %v1036
  %v1038 = vrot.slane %v1030, %v1037
  %1040 = vset.pattern.permute.xlu0 2
  %1041 = vperm.xlu0 %1040, %v913
  %v1042 = vpop.permute.xlu0 %1041
  %v1045 = vunpack.c.l.s4 839922192
  %v1046 = vunpack.c.0.s8 %v1045
  %v1047 = vlaneseq
  %v1048 = vshrl.u32 %v1047, 7
  %v1049 = vsub.s32 %v1046, %v1048
  %v1050 = vrot.slane %v1042, %v1049
  %1052 = vset.pattern.permute.xlu0 2
  %1053 = vperm.xlu0 %1052, %v914
  %v1054 = vpop.permute.xlu0 %1053
  %v1057 = vunpack.c.l.s4 839922192
  %v1058 = vunpack.c.0.s8 %v1057
  %v1059 = vlaneseq
  %v1060 = vshrl.u32 %v1059, 7
  %v1061 = vsub.s32 %v1058, %v1060
  %v1062 = vrot.slane %v1054, %v1061
  %1064 = vset.pattern.permute.xlu0 2
  %1065 = vperm.xlu0 %1064, %v915
  %v1066 = vpop.permute.xlu0 %1065
  %v1069 = vunpack.c.l.s4 839922192
  %v1070 = vunpack.c.0.s8 %v1069
  %v1071 = vlaneseq
  %v1072 = vshrl.u32 %v1071, 7
  %v1073 = vsub.s32 %v1070, %v1072
  %v1074 = vrot.slane %v1066, %v1073
  %1076 = vset.pattern.permute.xlu0 2
  %1077 = vperm.xlu0 %1076, %v916
  %v1078 = vpop.permute.xlu0 %1077
  %v1081 = vunpack.c.l.s4 839922192
  %v1082 = vunpack.c.0.s8 %v1081
  %v1083 = vlaneseq
  %v1084 = vshrl.u32 %v1083, 7
  %v1085 = vsub.s32 %v1082, %v1084
  %v1086 = vrot.slane %v1078, %v1085
  %1088 = vset.pattern.permute.xlu0 2
  %1089 = vperm.xlu0 %1088, %v917
  %v1090 = vpop.permute.xlu0 %1089
  %v1093 = vunpack.c.l.s4 839922192
  %v1094 = vunpack.c.0.s8 %v1093
  %v1095 = vlaneseq
  %v1096 = vshrl.u32 %v1095, 7
  %v1097 = vsub.s32 %v1094, %v1096
  %v1098 = vrot.slane %v1090, %v1097
  %1100 = vset.pattern.permute.xlu0 2
  %1101 = vperm.xlu0 %1100, %v918
  %v1102 = vpop.permute.xlu0 %1101
  %v1105 = vunpack.c.l.s4 839922192
  %v1106 = vunpack.c.0.s8 %v1105
  %v1107 = vlaneseq
  %v1108 = vshrl.u32 %v1107, 7
  %v1109 = vsub.s32 %v1106, %v1108
  %v1110 = vrot.slane %v1102, %v1109
  %v1112 = vcombine.high %v902, %v902
  %v1114 = vunpack.c.l.s4 1983009808
  %v1115 = vunpack.c.0.s8 %v1114
  %v1116 = vlaneseq
  %v1117 = vshrl.u32 %v1116, 7
  %v1118 = vsub.s32 %v1115, %v1117
  %v1119 = vrot.slane %v902, %v1118
  %v1121 = vunpack.c.l.s4 1983009808
  %v1122 = vunpack.c.0.s8 %v1121
  %v1123 = vlaneseq
  %v1124 = vshrl.u32 %v1123, 7
  %v1125 = vsub.s32 %v1122, %v1124
  %v1126 = vrot.slane %v1112, %v1125
  %v1127 = vcombine.high %v1119, %v1119
  %v1128 = vcombine.high %v1126, %v1126
  %v1130 = vpack.i.b16 %v1119, %v1119
  %v1132 = vlaneseq
  %v1133 = vshrl.u32 %v1132, 7
  %v1134 = vsub.s32 1, %v1133
  %v1135 = vrot.slane %v1130, %v1134
  %v1137 = vpack.i.b16 %v1127, %v1127
  %v1139 = vlaneseq
  %v1140 = vshrl.u32 %v1139, 7
  %v1141 = vsub.s32 1, %v1140
  %v1142 = vrot.slane %v1137, %v1141
  %v1144 = vpack.i.b16 %v1126, %v1126
  %v1146 = vlaneseq
  %v1147 = vshrl.u32 %v1146, 7
  %v1148 = vsub.s32 1, %v1147
  %v1149 = vrot.slane %v1144, %v1148
  %v1151 = vpack.i.b16 %v1128, %v1128
  %v1153 = vlaneseq
  %v1154 = vshrl.u32 %v1153, 7
  %v1155 = vsub.s32 1, %v1154
  %v1156 = vrot.slane %v1151, %v1155
  %v1161 = vunpack.c.l.b16 %v1135
  %v1162 = vunpack.c.l.b16 %v1142
  %v1163 = vunpack.c.l.b16 %v1149
  %v1164 = vunpack.c.l.b16 %v1156
  %v1165 = vpack.c.b16 %v1162, %v1161
  %v1166 = vpack.c.b16 %v1164, %v1163
  %v1169 = vmul.bf16 %v930, %v1165
  %v1170 = vmul.bf16 %v930, %v1166
  %v1171 = vmul.bf16 %v942, %v1165
  %v1172 = vmul.bf16 %v942, %v1166
  %v1173 = vmul.bf16 %v954, %v1165
  %v1174 = vmul.bf16 %v954, %v1166
  %v1175 = vmul.bf16 %v966, %v1165
  %v1176 = vmul.bf16 %v966, %v1166
  %v1177 = vmul.bf16 %v978, %v1165
  %v1178 = vmul.bf16 %v978, %v1166
  %v1179 = vmul.bf16 %v990, %v1165
  %v1180 = vmul.bf16 %v990, %v1166
  %v1181 = vmul.bf16 %v1002, %v1165
  %v1182 = vmul.bf16 %v1002, %v1166
  %v1183 = vmul.bf16 %v1014, %v1165
  %v1184 = vmul.bf16 %v1014, %v1166
  %v1185 = vmul.bf16 %v1026, %v1165
  %v1186 = vmul.bf16 %v1026, %v1166
  %v1187 = vmul.bf16 %v1038, %v1165
  %v1188 = vmul.bf16 %v1038, %v1166
  %v1189 = vmul.bf16 %v1050, %v1165
  %v1190 = vmul.bf16 %v1050, %v1166
  %v1191 = vmul.bf16 %v1062, %v1165
  %v1192 = vmul.bf16 %v1062, %v1166
  %v1193 = vmul.bf16 %v1074, %v1165
  %v1194 = vmul.bf16 %v1074, %v1166
  %v1195 = vmul.bf16 %v1086, %v1165
  %v1196 = vmul.bf16 %v1086, %v1166
  %v1197 = vmul.bf16 %v1098, %v1165
  %v1198 = vmul.bf16 %v1098, %v1166
  %v1199 = vmul.bf16 %v1110, %v1165
  %v1200 = vmul.bf16 %v1110, %v1166
  %v1201 = vadd.bf16 %v870, %v1169
  %v1202 = vadd.bf16 %v871, %v1170
  %v1203 = vadd.bf16 %v872, %v1171
  %v1204 = vadd.bf16 %v873, %v1172
  %v1205 = vadd.bf16 %v874, %v1173
  %v1206 = vadd.bf16 %v875, %v1174
  %v1207 = vadd.bf16 %v876, %v1175
  %v1208 = vadd.bf16 %v877, %v1176
  %v1209 = vadd.bf16 %v878, %v1177
  %v1210 = vadd.bf16 %v879, %v1178
  %v1211 = vadd.bf16 %v880, %v1179
  %v1212 = vadd.bf16 %v881, %v1180
  %v1213 = vadd.bf16 %v882, %v1181
  %v1214 = vadd.bf16 %v883, %v1182
  %v1215 = vadd.bf16 %v884, %v1183
  %v1216 = vadd.bf16 %v885, %v1184
  %v1217 = vadd.bf16 %v886, %v1185
  %v1218 = vadd.bf16 %v887, %v1186
  %v1219 = vadd.bf16 %v888, %v1187
  %v1220 = vadd.bf16 %v889, %v1188
  %v1221 = vadd.bf16 %v890, %v1189
  %v1222 = vadd.bf16 %v891, %v1190
  %v1223 = vadd.bf16 %v892, %v1191
  %v1224 = vadd.bf16 %v893, %v1192
  %v1225 = vadd.bf16 %v894, %v1193
  %v1226 = vadd.bf16 %v895, %v1194
  %v1227 = vadd.bf16 %v896, %v1195
  %v1228 = vadd.bf16 %v897, %v1196
  %v1229 = vadd.bf16 %v898, %v1197
  %v1230 = vadd.bf16 %v899, %v1198
  %v1231 = vadd.bf16 %v900, %v1199
  %v1232 = vadd.bf16 %v901, %v1200
  %v1233 = vmax.bf16 %v1201, 0
  %v1234 = vmax.bf16 %v1202, 0
  %v1235 = vmax.bf16 %v1203, 0
  %v1236 = vmax.bf16 %v1204, 0
  %v1237 = vmax.bf16 %v1205, 0
  %v1238 = vmax.bf16 %v1206, 0
  %v1239 = vmax.bf16 %v1207, 0
  %v1240 = vmax.bf16 %v1208, 0
  %v1241 = vmax.bf16 %v1209, 0
  %v1242 = vmax.bf16 %v1210, 0
  %v1243 = vmax.bf16 %v1211, 0
  %v1244 = vmax.bf16 %v1212, 0
  %v1245 = vmax.bf16 %v1213, 0
  %v1246 = vmax.bf16 %v1214, 0
  %v1247 = vmax.bf16 %v1215, 0
  %v1248 = vmax.bf16 %v1216, 0
  %v1249 = vmax.bf16 %v1217, 0
  %v1250 = vmax.bf16 %v1218, 0
  %v1251 = vmax.bf16 %v1219, 0
  %v1252 = vmax.bf16 %v1220, 0
  %v1253 = vmax.bf16 %v1221, 0
  %v1254 = vmax.bf16 %v1222, 0
  %v1255 = vmax.bf16 %v1223, 0
  %v1256 = vmax.bf16 %v1224, 0
  %v1257 = vmax.bf16 %v1225, 0
  %v1258 = vmax.bf16 %v1226, 0
  %v1259 = vmax.bf16 %v1227, 0
  %v1260 = vmax.bf16 %v1228, 0
  %v1261 = vmax.bf16 %v1229, 0
  %v1262 = vmax.bf16 %v1230, 0
  %v1263 = vmax.bf16 %v1231, 0
  %v1264 = vmax.bf16 %v1232, 0
  %v1265 = vld [vmem:[%s3] sm:$0xf]
  %v1266 = vld [vmem:[%s3 + $0x4] sm:$0xf]
  %v1267 = vld [vmem:[%s3 + $0x8] sm:$0xf]
  %v1268 = vld [vmem:[%s3 + $0xc] sm:$0xf]
  %v1269 = vld [vmem:[%s3 + $0x10] sm:$0xf]
  %v1270 = vld [vmem:[%s3 + $0x14] sm:$0xf]
  %v1271 = vld [vmem:[%s3 + $0x18] sm:$0xf]
  %v1272 = vld [vmem:[%s3 + $0x1c] sm:$0xf]
  %v1273 = vld [vmem:[%s3 + $0x20] sm:$0xf]
  %v1274 = vld [vmem:[%s3 + $0x24] sm:$0xf]
  %v1275 = vld [vmem:[%s3 + $0x28] sm:$0xf]
  %v1276 = vld [vmem:[%s3 + $0x2c] sm:$0xf]
  %v1277 = vld [vmem:[%s3 + $0x30] sm:$0xf]
  %v1278 = vld [vmem:[%s3 + $0x34] sm:$0xf]
  %v1279 = vld [vmem:[%s3 + $0x38] sm:$0xf]
  %v1280 = vld [vmem:[%s3 + $0x3c] sm:$0xf]
  %v1297 = vunpack.c.l.b16 %v1265
  %v1298 = vunpack.c.l.b16 %v1266
  %v1299 = vunpack.c.l.b16 %v1267
  %v1300 = vunpack.c.l.b16 %v1268
  %v1301 = vunpack.c.l.b16 %v1269
  %v1302 = vunpack.c.l.b16 %v1270
  %v1303 = vunpack.c.l.b16 %v1271
  %v1304 = vunpack.c.l.b16 %v1272
  %v1305 = vunpack.c.l.b16 %v1273
  %v1306 = vunpack.c.l.b16 %v1274
  %v1307 = vunpack.c.l.b16 %v1275
  %v1308 = vunpack.c.l.b16 %v1276
  %v1309 = vunpack.c.l.b16 %v1277
  %v1310 = vunpack.c.l.b16 %v1278
  %v1311 = vunpack.c.l.b16 %v1279
  %v1312 = vunpack.c.l.b16 %v1280
  %v1313 = vpack.c.b16 %v1298, %v1297
  %v1314 = vpack.c.b16 %v1300, %v1299
  %v1315 = vpack.c.b16 %v1302, %v1301
  %v1316 = vpack.c.b16 %v1304, %v1303
  %v1317 = vpack.c.b16 %v1306, %v1305
  %v1318 = vpack.c.b16 %v1308, %v1307
  %v1319 = vpack.c.b16 %v1310, %v1309
  %v1320 = vpack.c.b16 %v1312, %v1311
  %v1361 = vunpack.c.l.b16 %v1233
  %v1362 = vunpack.c.h.b16 %v1233
  %v1363 = vunpack.c.l.b16 %v1234
  %v1364 = vunpack.c.h.b16 %v1234
  %v1365 = vunpack.c.l.b16 %v1235
  %v1366 = vunpack.c.h.b16 %v1235
  %v1367 = vunpack.c.l.b16 %v1236
  %v1368 = vunpack.c.h.b16 %v1236
  %v1369 = vunpack.c.l.b16 %v1237
  %v1370 = vunpack.c.h.b16 %v1237
  %v1371 = vunpack.c.l.b16 %v1238
  %v1372 = vunpack.c.h.b16 %v1238
  %v1373 = vunpack.c.l.b16 %v1239
  %v1374 = vunpack.c.h.b16 %v1239
  %v1375 = vunpack.c.l.b16 %v1240
  %v1376 = vunpack.c.h.b16 %v1240
  %v1377 = vunpack.c.l.b16 %v1241
  %v1378 = vunpack.c.h.b16 %v1241
  %v1379 = vunpack.c.l.b16 %v1242
  %v1380 = vunpack.c.h.b16 %v1242
  %v1381 = vunpack.c.l.b16 %v1243
  %v1382 = vunpack.c.h.b16 %v1243
  %v1383 = vunpack.c.l.b16 %v1244
  %v1384 = vunpack.c.h.b16 %v1244
  %v1385 = vunpack.c.l.b16 %v1245
  %v1386 = vunpack.c.h.b16 %v1245
  %v1387 = vunpack.c.l.b16 %v1246
  %v1388 = vunpack.c.h.b16 %v1246
  %v1389 = vunpack.c.l.b16 %v1247
  %v1390 = vunpack.c.h.b16 %v1247
  %v1391 = vunpack.c.l.b16 %v1248
  %v1392 = vunpack.c.h.b16 %v1248
  %v1393 = vunpack.c.l.b16 %v1249
  %v1394 = vunpack.c.h.b16 %v1249
  %v1395 = vunpack.c.l.b16 %v1250
  %v1396 = vunpack.c.h.b16 %v1250
  %v1397 = vunpack.c.l.b16 %v1251
  %v1398 = vunpack.c.h.b16 %v1251
  %v1399 = vunpack.c.l.b16 %v1252
  %v1400 = vunpack.c.h.b16 %v1252
  %v1401 = vunpack.c.l.b16 %v1253
  %v1402 = vunpack.c.h.b16 %v1253
  %v1403 = vunpack.c.l.b16 %v1254
  %v1404 = vunpack.c.h.b16 %v1254
  %v1405 = vunpack.c.l.b16 %v1255
  %v1406 = vunpack.c.h.b16 %v1255
  %v1407 = vunpack.c.l.b16 %v1256
  %v1408 = vunpack.c.h.b16 %v1256
  %v1409 = vunpack.c.l.b16 %v1257
  %v1410 = vunpack.c.h.b16 %v1257
  %v1411 = vunpack.c.l.b16 %v1258
  %v1412 = vunpack.c.h.b16 %v1258
  %v1413 = vunpack.c.l.b16 %v1259
  %v1414 = vunpack.c.h.b16 %v1259
  %v1415 = vunpack.c.l.b16 %v1260
  %v1416 = vunpack.c.h.b16 %v1260
  %v1417 = vunpack.c.l.b16 %v1261
  %v1418 = vunpack.c.h.b16 %v1261
  %v1419 = vunpack.c.l.b16 %v1262
  %v1420 = vunpack.c.h.b16 %v1262
  %v1421 = vunpack.c.l.b16 %v1263
  %v1422 = vunpack.c.h.b16 %v1263
  %v1423 = vunpack.c.l.b16 %v1264
  %v1424 = vunpack.c.h.b16 %v1264
  %v1425 = vpack.c.b16 %v1365, %v1361
  %v1426 = vpack.c.b16 %v1366, %v1362
  %v1427 = vpack.c.b16 %v1367, %v1363
  %v1428 = vpack.c.b16 %v1368, %v1364
  %v1429 = vpack.c.b16 %v1373, %v1369
  %v1430 = vpack.c.b16 %v1374, %v1370
  %v1431 = vpack.c.b16 %v1375, %v1371
  %v1432 = vpack.c.b16 %v1376, %v1372
  %v1433 = vpack.c.b16 %v1381, %v1377
  %v1434 = vpack.c.b16 %v1382, %v1378
  %v1435 = vpack.c.b16 %v1383, %v1379
  %v1436 = vpack.c.b16 %v1384, %v1380
  %v1437 = vpack.c.b16 %v1389, %v1385
  %v1438 = vpack.c.b16 %v1390, %v1386
  %v1439 = vpack.c.b16 %v1391, %v1387
  %v1440 = vpack.c.b16 %v1392, %v1388
  %v1441 = vpack.c.b16 %v1397, %v1393
  %v1442 = vpack.c.b16 %v1398, %v1394
  %v1443 = vpack.c.b16 %v1399, %v1395
  %v1444 = vpack.c.b16 %v1400, %v1396
  %v1445 = vpack.c.b16 %v1405, %v1401
  %v1446 = vpack.c.b16 %v1406, %v1402
  %v1447 = vpack.c.b16 %v1407, %v1403
  %v1448 = vpack.c.b16 %v1408, %v1404
  %v1449 = vpack.c.b16 %v1413, %v1409
  %v1450 = vpack.c.b16 %v1414, %v1410
  %v1451 = vpack.c.b16 %v1415, %v1411
  %v1452 = vpack.c.b16 %v1416, %v1412
  %v1453 = vpack.c.b16 %v1421, %v1417
  %v1454 = vpack.c.b16 %v1422, %v1418
  %v1455 = vpack.c.b16 %v1423, %v1419
  %v1456 = vpack.c.b16 %v1424, %v1420
  %1489 = vmatprep.subr.bf16.mxu0 %v1426
  %1490 = vmatpush1.bf16.msra.mxu0 %v1425
  %1491 = vmatprep.subr.bf16.mxu0 %v1430
  %1492 = vmatpush1.bf16.msra.mxu0 %v1429
  %1493 = vmatprep.subr.bf16.mxu0 %v1434
  %1494 = vmatpush1.bf16.msra.mxu0 %v1433
  %1495 = vmatprep.subr.bf16.mxu0 %v1438
  %1496 = vmatpush1.bf16.msra.mxu0 %v1437
  %1497 = vmatprep.subr.bf16.mxu0 %v1442
  %1498 = vmatpush1.bf16.msra.mxu0 %v1441
  %1499 = vmatprep.subr.bf16.mxu0 %v1446
  %1500 = vmatpush1.bf16.msra.mxu0 %v1445
  %1501 = vmatprep.subr.bf16.mxu0 %v1450
  %1502 = vmatpush1.bf16.msra.mxu0 %v1449
  %1503 = vmatprep.subr.bf16.mxu0 %v1454
  %1504 = vmatpush1.bf16.msra.mxu0 %v1453
  %1505 = vmatprep.subr.bf16.mxu0 0
  %1506 = vmatpush1.bf16.msra.mxu0 0
  %1507 = vmatprep.subr.bf16.mxu0 0
  %1508 = vmatpush1.bf16.msra.mxu0 0
  %1509 = vmatprep.subr.bf16.mxu0 0
  %1510 = vmatpush1.bf16.msra.mxu0 0
  %1511 = vmatprep.subr.bf16.mxu0 0
  %1512 = vmatpush1.bf16.msra.mxu0 0
  %1513 = vmatprep.subr.bf16.mxu0 0
  %1514 = vmatpush1.bf16.msra.mxu0 0
  %1515 = vmatprep.subr.bf16.mxu0 0
  %1516 = vmatpush1.bf16.msra.mxu0 0
  %1517 = vmatprep.subr.bf16.mxu0 0
  %1518 = vmatpush1.bf16.msra.mxu0 0
  %1519 = vmatprep.subr.bf16.mxu0 0
  %1520 = vmatpush1.bf16.msra.mxu0 0
  %1521 = vmatprep.mubr.bf16.mxu0 0
  %1522 = vmatmul.mubr.bf16.gmra.mrb[0].mxu0 %v1313
  %v1523 = vpop.f32.mrb[0].mxu0
  %v1524 = vadd.f32 0.0, %v1523
  %v1525 = vpop.f32.mrb[0].mxu0
  %v1526 = vadd.f32 0.0, %v1525
  %v1527 = vpop.f32.mrb[0].mxu0
  %v1528 = vadd.f32 0.0, %v1527
  %v1529 = vpop.f32.mrb[0].mxu0
  %v1530 = vadd.f32 0.0, %v1529
  %1531 = vmatprep.mubr.bf16.mxu0 0
  %1532 = vmatmul.mubr.bf16.gmra.mrb[0].mxu0 %v1314
  %v1533 = vpop.f32.mrb[0].mxu0
  %v1534 = vadd.f32 0.0, %v1533
  %v1535 = vpop.f32.mrb[0].mxu0
  %v1536 = vadd.f32 0.0, %v1535
  %v1537 = vpop.f32.mrb[0].mxu0
  %v1538 = vadd.f32 0.0, %v1537
  %v1539 = vpop.f32.mrb[0].mxu0
  %v1540 = vadd.f32 0.0, %v1539
  %1541 = vmatprep.mubr.bf16.mxu0 0
  %1542 = vmatmul.mubr.bf16.gmra.mrb[0].mxu0 %v1315
  %v1543 = vpop.f32.mrb[0].mxu0
  %v1544 = vadd.f32 0.0, %v1543
  %v1545 = vpop.f32.mrb[0].mxu0
  %v1546 = vadd.f32 0.0, %v1545
  %v1547 = vpop.f32.mrb[0].mxu0
  %v1548 = vadd.f32 0.0, %v1547
  %v1549 = vpop.f32.mrb[0].mxu0
  %v1550 = vadd.f32 0.0, %v1549
  %1551 = vmatprep.mubr.bf16.mxu0 0
  %1552 = vmatmul.mubr.bf16.gmra.mrb[0].mxu0 %v1316
  %v1553 = vpop.f32.mrb[0].mxu0
  %v1554 = vadd.f32 0.0, %v1553
  %v1555 = vpop.f32.mrb[0].mxu0
  %v1556 = vadd.f32 0.0, %v1555
  %v1557 = vpop.f32.mrb[0].mxu0
  %v1558 = vadd.f32 0.0, %v1557
  %v1559 = vpop.f32.mrb[0].mxu0
  %v1560 = vadd.f32 0.0, %v1559
  %1561 = vmatprep.mubr.bf16.mxu0 0
  %1562 = vmatmul.mubr.bf16.gmra.mrb[0].mxu0 %v1317
  %v1563 = vpop.f32.mrb[0].mxu0
  %v1564 = vadd.f32 0.0, %v1563
  %v1565 = vpop.f32.mrb[0].mxu0
  %v1566 = vadd.f32 0.0, %v1565
  %v1567 = vpop.f32.mrb[0].mxu0
  %v1568 = vadd.f32 0.0, %v1567
  %v1569 = vpop.f32.mrb[0].mxu0
  %v1570 = vadd.f32 0.0, %v1569
  %1571 = vmatprep.mubr.bf16.mxu0 0
  %1572 = vmatmul.mubr.bf16.gmra.mrb[0].mxu0 %v1318
  %v1573 = vpop.f32.mrb[0].mxu0
  %v1574 = vadd.f32 0.0, %v1573
  %v1575 = vpop.f32.mrb[0].mxu0
  %v1576 = vadd.f32 0.0, %v1575
  %v1577 = vpop.f32.mrb[0].mxu0
  %v1578 = vadd.f32 0.0, %v1577
  %v1579 = vpop.f32.mrb[0].mxu0
  %v1580 = vadd.f32 0.0, %v1579
  %1581 = vmatprep.mubr.bf16.mxu0 0
  %1582 = vmatmul.mubr.bf16.gmra.mrb[0].mxu0 %v1319
  %v1583 = vpop.f32.mrb[0].mxu0
  %v1584 = vadd.f32 0.0, %v1583
  %v1585 = vpop.f32.mrb[0].mxu0
  %v1586 = vadd.f32 0.0, %v1585
  %v1587 = vpop.f32.mrb[0].mxu0
  %v1588 = vadd.f32 0.0, %v1587
  %v1589 = vpop.f32.mrb[0].mxu0
  %v1590 = vadd.f32 0.0, %v1589
  %1591 = vmatprep.mubr.bf16.mxu0 0
  %1592 = vmatmul.mubr.bf16.gmra.mrb[0].mxu0 %v1320
  %v1593 = vpop.f32.mrb[0].mxu0
  %v1594 = vadd.f32 0.0, %v1593
  %v1595 = vpop.f32.mrb[0].mxu0
  %v1596 = vadd.f32 0.0, %v1595
  %v1597 = vpop.f32.mrb[0].mxu0
  %v1598 = vadd.f32 0.0, %v1597
  %v1599 = vpop.f32.mrb[0].mxu0
  %v1600 = vadd.f32 0.0, %v1599
  %1601 = vdwg.mxu0
  %1602 = vmatprep.subr.bf16.mxu0 %v1428
  %1603 = vmatpush1.bf16.msra.mxu0 %v1427
  %1604 = vmatprep.subr.bf16.mxu0 %v1432
  %1605 = vmatpush1.bf16.msra.mxu0 %v1431
  %1606 = vmatprep.subr.bf16.mxu0 %v1436
  %1607 = vmatpush1.bf16.msra.mxu0 %v1435
  %1608 = vmatprep.subr.bf16.mxu0 %v1440
  %1609 = vmatpush1.bf16.msra.mxu0 %v1439
  %1610 = vmatprep.subr.bf16.mxu0 %v1444
  %1611 = vmatpush1.bf16.msra.mxu0 %v1443
  %1612 = vmatprep.subr.bf16.mxu0 %v1448
  %1613 = vmatpush1.bf16.msra.mxu0 %v1447
  %1614 = vmatprep.subr.bf16.mxu0 %v1452
  %1615 = vmatpush1.bf16.msra.mxu0 %v1451
  %1616 = vmatprep.subr.bf16.mxu0 %v1456
  %1617 = vmatpush1.bf16.msra.mxu0 %v1455
  %1618 = vmatprep.subr.bf16.mxu0 0
  %1619 = vmatpush1.bf16.msra.mxu0 0
  %1620 = vmatprep.subr.bf16.mxu0 0
  %1621 = vmatpush1.bf16.msra.mxu0 0
  %1622 = vmatprep.subr.bf16.mxu0 0
  %1623 = vmatpush1.bf16.msra.mxu0 0
  %1624 = vmatprep.subr.bf16.mxu0 0
  %1625 = vmatpush1.bf16.msra.mxu0 0
  %1626 = vmatprep.subr.bf16.mxu0 0
  %1627 = vmatpush1.bf16.msra.mxu0 0
  %1628 = vmatprep.subr.bf16.mxu0 0
  %1629 = vmatpush1.bf16.msra.mxu0 0
  %1630 = vmatprep.subr.bf16.mxu0 0
  %1631 = vmatpush1.bf16.msra.mxu0 0
  %1632 = vmatprep.subr.bf16.mxu0 0
  %1633 = vmatpush1.bf16.msra.mxu0 0
  %1634 = vmatprep.mubr.bf16.mxu0 0
  %1635 = vmatmul.mubr.bf16.gmra.mrb[0].mxu0 %v1313
  %v1636 = vpop.f32.mrb[0].mxu0
  %v1637 = vadd.f32 0.0, %v1636
  %v1638 = vpop.f32.mrb[0].mxu0
  %v1639 = vadd.f32 0.0, %v1638
  %v1640 = vpop.f32.mrb[0].mxu0
  %v1641 = vadd.f32 0.0, %v1640
  %v1642 = vpop.f32.mrb[0].mxu0
  %v1643 = vadd.f32 0.0, %v1642
  %1644 = vmatprep.mubr.bf16.mxu0 0
  %1645 = vmatmul.mubr.bf16.gmra.mrb[0].mxu0 %v1314
  %v1646 = vpop.f32.mrb[0].mxu0
  %v1647 = vadd.f32 0.0, %v1646
  %v1648 = vpop.f32.mrb[0].mxu0
  %v1649 = vadd.f32 0.0, %v1648
  %v1650 = vpop.f32.mrb[0].mxu0
  %v1651 = vadd.f32 0.0, %v1650
  %v1652 = vpop.f32.mrb[0].mxu0
  %v1653 = vadd.f32 0.0, %v1652
  %1654 = vmatprep.mubr.bf16.mxu0 0
  %1655 = vmatmul.mubr.bf16.gmra.mrb[0].mxu0 %v1315
  %v1656 = vpop.f32.mrb[0].mxu0
  %v1657 = vadd.f32 0.0, %v1656
  %v1658 = vpop.f32.mrb[0].mxu0
  %v1659 = vadd.f32 0.0, %v1658
  %v1660 = vpop.f32.mrb[0].mxu0
  %v1661 = vadd.f32 0.0, %v1660
  %v1662 = vpop.f32.mrb[0].mxu0
  %v1663 = vadd.f32 0.0, %v1662
  %1664 = vmatprep.mubr.bf16.mxu0 0
  %1665 = vmatmul.mubr.bf16.gmra.mrb[0].mxu0 %v1316
  %v1666 = vpop.f32.mrb[0].mxu0
  %v1667 = vadd.f32 0.0, %v1666
  %v1668 = vpop.f32.mrb[0].mxu0
  %v1669 = vadd.f32 0.0, %v1668
  %v1670 = vpop.f32.mrb[0].mxu0
  %v1671 = vadd.f32 0.0, %v1670
  %v1672 = vpop.f32.mrb[0].mxu0
  %v1673 = vadd.f32 0.0, %v1672
  %1674 = vmatprep.mubr.bf16.mxu0 0
  %1675 = vmatmul.mubr.bf16.gmra.mrb[0].mxu0 %v1317
  %v1676 = vpop.f32.mrb[0].mxu0
  %v1677 = vadd.f32 0.0, %v1676
  %v1678 = vpop.f32.mrb[0].mxu0
  %v1679 = vadd.f32 0.0, %v1678
  %v1680 = vpop.f32.mrb[0].mxu0
  %v1681 = vadd.f32 0.0, %v1680
  %v1682 = vpop.f32.mrb[0].mxu0
  %v1683 = vadd.f32 0.0, %v1682
  %1684 = vmatprep.mubr.bf16.mxu0 0
  %1685 = vmatmul.mubr.bf16.gmra.mrb[0].mxu0 %v1318
  %v1686 = vpop.f32.mrb[0].mxu0
  %v1687 = vadd.f32 0.0, %v1686
  %v1688 = vpop.f32.mrb[0].mxu0
  %v1689 = vadd.f32 0.0, %v1688
  %v1690 = vpop.f32.mrb[0].mxu0
  %v1691 = vadd.f32 0.0, %v1690
  %v1692 = vpop.f32.mrb[0].mxu0
  %v1693 = vadd.f32 0.0, %v1692
  %1694 = vmatprep.mubr.bf16.mxu0 0
  %1695 = vmatmul.mubr.bf16.gmra.mrb[0].mxu0 %v1319
  %v1696 = vpop.f32.mrb[0].mxu0
  %v1697 = vadd.f32 0.0, %v1696
  %v1698 = vpop.f32.mrb[0].mxu0
  %v1699 = vadd.f32 0.0, %v1698
  %v1700 = vpop.f32.mrb[0].mxu0
  %v1701 = vadd.f32 0.0, %v1700
  %v1702 = vpop.f32.mrb[0].mxu0
  %v1703 = vadd.f32 0.0, %v1702
  %1704 = vmatprep.mubr.bf16.mxu0 0
  %1705 = vmatmul.mubr.bf16.gmra.mrb[0].mxu0 %v1320
  %v1706 = vpop.f32.mrb[0].mxu0
  %v1707 = vadd.f32 0.0, %v1706
  %v1708 = vpop.f32.mrb[0].mxu0
  %v1709 = vadd.f32 0.0, %v1708
  %v1710 = vpop.f32.mrb[0].mxu0
  %v1711 = vadd.f32 0.0, %v1710
  %v1712 = vpop.f32.mrb[0].mxu0
  %v1713 = vadd.f32 0.0, %v1712
  %1714 = vdwg.mxu0
  %v1715 = vpack.c.bf16 %v1528, %v1524
  %v1716 = vpack.c.bf16 %v1530, %v1526
  %v1717 = vpack.c.bf16 %v1641, %v1637
  %v1718 = vpack.c.bf16 %v1643, %v1639
  %v1719 = vpack.c.bf16 %v1538, %v1534
  %v1720 = vpack.c.bf16 %v1540, %v1536
  %v1721 = vpack.c.bf16 %v1651, %v1647
  %v1722 = vpack.c.bf16 %v1653, %v1649
  %v1723 = vpack.c.bf16 %v1548, %v1544
  %v1724 = vpack.c.bf16 %v1550, %v1546
  %v1725 = vpack.c.bf16 %v1661, %v1657
  %v1726 = vpack.c.bf16 %v1663, %v1659
  %v1727 = vpack.c.bf16 %v1558, %v1554
  %v1728 = vpack.c.bf16 %v1560, %v1556
  %v1729 = vpack.c.bf16 %v1671, %v1667
  %v1730 = vpack.c.bf16 %v1673, %v1669
  %v1731 = vpack.c.bf16 %v1568, %v1564
  %v1732 = vpack.c.bf16 %v1570, %v1566
  %v1733 = vpack.c.bf16 %v1681, %v1677
  %v1734 = vpack.c.bf16 %v1683, %v1679
  %v1735 = vpack.c.bf16 %v1578, %v1574
  %v1736 = vpack.c.bf16 %v1580, %v1576
  %v1737 = vpack.c.bf16 %v1691, %v1687
  %v1738 = vpack.c.bf16 %v1693, %v1689
  %v1739 = vpack.c.bf16 %v1588, %v1584
  %v1740 = vpack.c.bf16 %v1590, %v1586
  %v1741 = vpack.c.bf16 %v1701, %v1697
  %v1742 = vpack.c.bf16 %v1703, %v1699
  %v1743 = vpack.c.bf16 %v1598, %v1594
  %v1744 = vpack.c.bf16 %v1600, %v1596
  %v1745 = vpack.c.bf16 %v1711, %v1707
  %v1746 = vpack.c.bf16 %v1713, %v1709
  %v1747 = vld [vmem:[%s4] sm:$0xf]
  %v1748 = vld [vmem:[%s4 + $0x4] sm:$0xf]
  %v1749 = vld [vmem:[%s4 + $0x8] sm:$0xf]
  %v1750 = vld [vmem:[%s4 + $0xc] sm:$0xf]
  %v1751 = vld [vmem:[%s4 + $0x10] sm:$0xf]
  %v1752 = vld [vmem:[%s4 + $0x14] sm:$0xf]
  %v1753 = vld [vmem:[%s4 + $0x18] sm:$0xf]
  %v1754 = vld [vmem:[%s4 + $0x1c] sm:$0xf]
  %v1755 = vld [vmem:[%s4 + $0x20] sm:$0xf]
  %v1756 = vld [vmem:[%s4 + $0x24] sm:$0xf]
  %v1757 = vld [vmem:[%s4 + $0x28] sm:$0xf]
  %v1758 = vld [vmem:[%s4 + $0x2c] sm:$0xf]
  %v1759 = vld [vmem:[%s4 + $0x30] sm:$0xf]
  %v1760 = vld [vmem:[%s4 + $0x34] sm:$0xf]
  %v1761 = vld [vmem:[%s4 + $0x38] sm:$0xf]
  %v1762 = vld [vmem:[%s4 + $0x3c] sm:$0xf]
  %1764 = vset.pattern.permute.xlu0 0
  %1765 = vperm.xlu0 %1764, %v1747
  %v1766 = vpop.permute.xlu0 %1765
  %v1769 = vunpack.c.l.s4 839922192
  %v1770 = vunpack.c.0.s8 %v1769
  %v1771 = vlaneseq
  %v1772 = vshrl.u32 %v1771, 7
  %v1773 = vsub.s32 %v1770, %v1772
  %v1774 = vrot.slane %v1766, %v1773
  %1776 = vset.pattern.permute.xlu0 0
  %1777 = vperm.xlu0 %1776, %v1748
  %v1778 = vpop.permute.xlu0 %1777
  %v1781 = vunpack.c.l.s4 839922192
  %v1782 = vunpack.c.0.s8 %v1781
  %v1783 = vlaneseq
  %v1784 = vshrl.u32 %v1783, 7
  %v1785 = vsub.s32 %v1782, %v1784
  %v1786 = vrot.slane %v1778, %v1785
  %1788 = vset.pattern.permute.xlu0 0
  %1789 = vperm.xlu0 %1788, %v1749
  %v1790 = vpop.permute.xlu0 %1789
  %v1793 = vunpack.c.l.s4 839922192
  %v1794 = vunpack.c.0.s8 %v1793
  %v1795 = vlaneseq
  %v1796 = vshrl.u32 %v1795, 7
  %v1797 = vsub.s32 %v1794, %v1796
  %v1798 = vrot.slane %v1790, %v1797
  %1800 = vset.pattern.permute.xlu0 0
  %1801 = vperm.xlu0 %1800, %v1750
  %v1802 = vpop.permute.xlu0 %1801
  %v1805 = vunpack.c.l.s4 839922192
  %v1806 = vunpack.c.0.s8 %v1805
  %v1807 = vlaneseq
  %v1808 = vshrl.u32 %v1807, 7
  %v1809 = vsub.s32 %v1806, %v1808
  %v1810 = vrot.slane %v1802, %v1809
  %1812 = vset.pattern.permute.xlu0 0
  %1813 = vperm.xlu0 %1812, %v1751
  %v1814 = vpop.permute.xlu0 %1813
  %v1817 = vunpack.c.l.s4 839922192
  %v1818 = vunpack.c.0.s8 %v1817
  %v1819 = vlaneseq
  %v1820 = vshrl.u32 %v1819, 7
  %v1821 = vsub.s32 %v1818, %v1820
  %v1822 = vrot.slane %v1814, %v1821
  %1824 = vset.pattern.permute.xlu0 0
  %1825 = vperm.xlu0 %1824, %v1752
  %v1826 = vpop.permute.xlu0 %1825
  %v1829 = vunpack.c.l.s4 839922192
  %v1830 = vunpack.c.0.s8 %v1829
  %v1831 = vlaneseq
  %v1832 = vshrl.u32 %v1831, 7
  %v1833 = vsub.s32 %v1830, %v1832
  %v1834 = vrot.slane %v1826, %v1833
  %1836 = vset.pattern.permute.xlu0 0
  %1837 = vperm.xlu0 %1836, %v1753
  %v1838 = vpop.permute.xlu0 %1837
  %v1841 = vunpack.c.l.s4 839922192
  %v1842 = vunpack.c.0.s8 %v1841
  %v1843 = vlaneseq
  %v1844 = vshrl.u32 %v1843, 7
  %v1845 = vsub.s32 %v1842, %v1844
  %v1846 = vrot.slane %v1838, %v1845
  %1848 = vset.pattern.permute.xlu0 0
  %1849 = vperm.xlu0 %1848, %v1754
  %v1850 = vpop.permute.xlu0 %1849
  %v1853 = vunpack.c.l.s4 839922192
  %v1854 = vunpack.c.0.s8 %v1853
  %v1855 = vlaneseq
  %v1856 = vshrl.u32 %v1855, 7
  %v1857 = vsub.s32 %v1854, %v1856
  %v1858 = vrot.slane %v1850, %v1857
  %1860 = vset.pattern.permute.xlu0 0
  %1861 = vperm.xlu0 %1860, %v1755
  %v1862 = vpop.permute.xlu0 %1861
  %v1865 = vunpack.c.l.s4 839922192
  %v1866 = vunpack.c.0.s8 %v1865
  %v1867 = vlaneseq
  %v1868 = vshrl.u32 %v1867, 7
  %v1869 = vsub.s32 %v1866, %v1868
  %v1870 = vrot.slane %v1862, %v1869
  %1872 = vset.pattern.permute.xlu0 0
  %1873 = vperm.xlu0 %1872, %v1756
  %v1874 = vpop.permute.xlu0 %1873
  %v1877 = vunpack.c.l.s4 839922192
  %v1878 = vunpack.c.0.s8 %v1877
  %v1879 = vlaneseq
  %v1880 = vshrl.u32 %v1879, 7
  %v1881 = vsub.s32 %v1878, %v1880
  %v1882 = vrot.slane %v1874, %v1881
  %1884 = vset.pattern.permute.xlu0 0
  %1885 = vperm.xlu0 %1884, %v1757
  %v1886 = vpop.permute.xlu0 %1885
  %v1889 = vunpack.c.l.s4 839922192
  %v1890 = vunpack.c.0.s8 %v1889
  %v1891 = vlaneseq
  %v1892 = vshrl.u32 %v1891, 7
  %v1893 = vsub.s32 %v1890, %v1892
  %v1894 = vrot.slane %v1886, %v1893
  %1896 = vset.pattern.permute.xlu0 0
  %1897 = vperm.xlu0 %1896, %v1758
  %v1898 = vpop.permute.xlu0 %1897
  %v1901 = vunpack.c.l.s4 839922192
  %v1902 = vunpack.c.0.s8 %v1901
  %v1903 = vlaneseq
  %v1904 = vshrl.u32 %v1903, 7
  %v1905 = vsub.s32 %v1902, %v1904
  %v1906 = vrot.slane %v1898, %v1905
  %1908 = vset.pattern.permute.xlu0 0
  %1909 = vperm.xlu0 %1908, %v1759
  %v1910 = vpop.permute.xlu0 %1909
  %v1913 = vunpack.c.l.s4 839922192
  %v1914 = vunpack.c.0.s8 %v1913
  %v1915 = vlaneseq
  %v1916 = vshrl.u32 %v1915, 7
  %v1917 = vsub.s32 %v1914, %v1916
  %v1918 = vrot.slane %v1910, %v1917
  %1920 = vset.pattern.permute.xlu0 0
  %1921 = vperm.xlu0 %1920, %v1760
  %v1922 = vpop.permute.xlu0 %1921
  %v1925 = vunpack.c.l.s4 839922192
  %v1926 = vunpack.c.0.s8 %v1925
  %v1927 = vlaneseq
  %v1928 = vshrl.u32 %v1927, 7
  %v1929 = vsub.s32 %v1926, %v1928
  %v1930 = vrot.slane %v1922, %v1929
  %1932 = vset.pattern.permute.xlu0 0
  %1933 = vperm.xlu0 %1932, %v1761
  %v1934 = vpop.permute.xlu0 %1933
  %v1937 = vunpack.c.l.s4 839922192
  %v1938 = vunpack.c.0.s8 %v1937
  %v1939 = vlaneseq
  %v1940 = vshrl.u32 %v1939, 7
  %v1941 = vsub.s32 %v1938, %v1940
  %v1942 = vrot.slane %v1934, %v1941
  %1944 = vset.pattern.permute.xlu0 0
  %1945 = vperm.xlu0 %1944, %v1762
  %v1946 = vpop.permute.xlu0 %1945
  %v1949 = vunpack.c.l.s4 839922192
  %v1950 = vunpack.c.0.s8 %v1949
  %v1951 = vlaneseq
  %v1952 = vshrl.u32 %v1951, 7
  %v1953 = vsub.s32 %v1950, %v1952
  %v1954 = vrot.slane %v1946, %v1953
  %v1971 = vunpack.c.l.b16 %v1774
  %v1972 = vunpack.c.l.b16 %v1786
  %v1973 = vunpack.c.l.b16 %v1798
  %v1974 = vunpack.c.l.b16 %v1810
  %v1975 = vunpack.c.l.b16 %v1822
  %v1976 = vunpack.c.l.b16 %v1834
  %v1977 = vunpack.c.l.b16 %v1846
  %v1978 = vunpack.c.l.b16 %v1858
  %v1979 = vunpack.c.l.b16 %v1870
  %v1980 = vunpack.c.l.b16 %v1882
  %v1981 = vunpack.c.l.b16 %v1894
  %v1982 = vunpack.c.l.b16 %v1906
  %v1983 = vunpack.c.l.b16 %v1918
  %v1984 = vunpack.c.l.b16 %v1930
  %v1985 = vunpack.c.l.b16 %v1942
  %v1986 = vunpack.c.l.b16 %v1954
  %v1987 = vpack.c.b16 %v1972, %v1971
  %v1988 = vpack.c.b16 %v1974, %v1973
  %v1989 = vpack.c.b16 %v1976, %v1975
  %v1990 = vpack.c.b16 %v1978, %v1977
  %v1991 = vpack.c.b16 %v1980, %v1979
  %v1992 = vpack.c.b16 %v1982, %v1981
  %v1993 = vpack.c.b16 %v1984, %v1983
  %v1994 = vpack.c.b16 %v1986, %v1985
  %v2003 = vadd.bf16 %v1715, %v1987
  %v2004 = vadd.bf16 %v1716, %v1987
  %v2005 = vadd.bf16 %v1717, %v1987
  %v2006 = vadd.bf16 %v1718, %v1987
  %v2007 = vadd.bf16 %v1719, %v1988
  %v2008 = vadd.bf16 %v1720, %v1988
  %v2009 = vadd.bf16 %v1721, %v1988
  %v2010 = vadd.bf16 %v1722, %v1988
  %v2011 = vadd.bf16 %v1723, %v1989
  %v2012 = vadd.bf16 %v1724, %v1989
  %v2013 = vadd.bf16 %v1725, %v1989
  %v2014 = vadd.bf16 %v1726, %v1989
  %v2015 = vadd.bf16 %v1727, %v1990
  %v2016 = vadd.bf16 %v1728, %v1990
  %v2017 = vadd.bf16 %v1729, %v1990
  %v2018 = vadd.bf16 %v1730, %v1990
  %v2019 = vadd.bf16 %v1731, %v1991
  %v2020 = vadd.bf16 %v1732, %v1991
  %v2021 = vadd.bf16 %v1733, %v1991
  %v2022 = vadd.bf16 %v1734, %v1991
  %v2023 = vadd.bf16 %v1735, %v1992
  %v2024 = vadd.bf16 %v1736, %v1992
  %v2025 = vadd.bf16 %v1737, %v1992
  %v2026 = vadd.bf16 %v1738, %v1992
  %v2027 = vadd.bf16 %v1739, %v1993
  %v2028 = vadd.bf16 %v1740, %v1993
  %v2029 = vadd.bf16 %v1741, %v1993
  %v2030 = vadd.bf16 %v1742, %v1993
  %v2031 = vadd.bf16 %v1743, %v1994
  %v2032 = vadd.bf16 %v1744, %v1994
  %v2033 = vadd.bf16 %v1745, %v1994
  %v2034 = vadd.bf16 %v1746, %v1994
  %v2035 = vmax.bf16 %v2003, 0
  %v2036 = vmax.bf16 %v2004, 0
  %v2037 = vmax.bf16 %v2005, 0
  %v2038 = vmax.bf16 %v2006, 0
  %v2039 = vmax.bf16 %v2007, 0
  %v2040 = vmax.bf16 %v2008, 0
  %v2041 = vmax.bf16 %v2009, 0
  %v2042 = vmax.bf16 %v2010, 0
  %v2043 = vmax.bf16 %v2011, 0
  %v2044 = vmax.bf16 %v2012, 0
  %v2045 = vmax.bf16 %v2013, 0
  %v2046 = vmax.bf16 %v2014, 0
  %v2047 = vmax.bf16 %v2015, 0
  %v2048 = vmax.bf16 %v2016, 0
  %v2049 = vmax.bf16 %v2017, 0
  %v2050 = vmax.bf16 %v2018, 0
  %v2051 = vmax.bf16 %v2019, 0
  %v2052 = vmax.bf16 %v2020, 0
  %v2053 = vmax.bf16 %v2021, 0
  %v2054 = vmax.bf16 %v2022, 0
  %v2055 = vmax.bf16 %v2023, 0
  %v2056 = vmax.bf16 %v2024, 0
  %v2057 = vmax.bf16 %v2025, 0
  %v2058 = vmax.bf16 %v2026, 0
  %v2059 = vmax.bf16 %v2027, 0
  %v2060 = vmax.bf16 %v2028, 0
  %v2061 = vmax.bf16 %v2029, 0
  %v2062 = vmax.bf16 %v2030, 0
  %v2063 = vmax.bf16 %v2031, 0
  %v2064 = vmax.bf16 %v2032, 0
  %v2065 = vmax.bf16 %v2033, 0
  %v2066 = vmax.bf16 %v2034, 0
  %v2067 = vld [vmem:[%s5] sm:$0x1]
  %s2068 = sld [smem:[#allocation2]]
  %v2069 = vstv %s2068
  %2070 = vmatprep.subr.bf16.mxu0 %v2036
  %2071 = vmatpush1.bf16.msra.mxu0 %v2035
  %2072 = vmatprep.subr.bf16.mxu0 %v2040
  %2073 = vmatpush1.bf16.msra.mxu0 %v2039
  %2074 = vmatprep.subr.bf16.mxu0 %v2044
  %2075 = vmatpush1.bf16.msra.mxu0 %v2043
  %2076 = vmatprep.subr.bf16.mxu0 %v2048
  %2077 = vmatpush1.bf16.msra.mxu0 %v2047
  %2078 = vmatprep.subr.bf16.mxu0 %v2052
  %2079 = vmatpush1.bf16.msra.mxu0 %v2051
  %2080 = vmatprep.subr.bf16.mxu0 %v2056
  %2081 = vmatpush1.bf16.msra.mxu0 %v2055
  %2082 = vmatprep.subr.bf16.mxu0 %v2060
  %2083 = vmatpush1.bf16.msra.mxu0 %v2059
  %2084 = vmatprep.subr.bf16.mxu0 %v2064
  %2085 = vmatpush1.bf16.msra.mxu0 %v2063
  %2086 = vmatprep.subr.bf16.mxu0 0
  %2087 = vmatpush1.bf16.msra.mxu0 0
  %2088 = vmatprep.subr.bf16.mxu0 0
  %2089 = vmatpush1.bf16.msra.mxu0 0
  %2090 = vmatprep.subr.bf16.mxu0 0
  %2091 = vmatpush1.bf16.msra.mxu0 0
  %2092 = vmatprep.subr.bf16.mxu0 0
  %2093 = vmatpush1.bf16.msra.mxu0 0
  %2094 = vmatprep.subr.bf16.mxu0 0
  %2095 = vmatpush1.bf16.msra.mxu0 0
  %2096 = vmatprep.subr.bf16.mxu0 0
  %2097 = vmatpush1.bf16.msra.mxu0 0
  %2098 = vmatprep.subr.bf16.mxu0 0
  %2099 = vmatpush1.bf16.msra.mxu0 0
  %2100 = vmatprep.subr.bf16.mxu0 0
  %2101 = vmatpush1.bf16.msra.mxu0 0
  %2102 = vmatprep.mubr.bf16.mxu0 0
  %2103 = vmatmul.mubr.bf16.gmra.mrb[0].mxu0 %v2067
  %v2104 = vpop.f32.mrb[0].mxu0
  %v2105 = vadd.f32 %v2069, %v2104
  %v2106 = vpop.f32.mrb[0].mxu0
  %v2107 = vadd.f32 %v2069, %v2106
  %v2108 = vpop.f32.mrb[0].mxu0
  %v2109 = vpop.f32.mrb[0].mxu0
  %2110 = vdwg.mxu0
  %2111 = vmatprep.subr.bf16.mxu0 %v2038
  %2112 = vmatpush1.bf16.msra.mxu0 %v2037
  %2113 = vmatprep.subr.bf16.mxu0 %v2042
  %2114 = vmatpush1.bf16.msra.mxu0 %v2041
  %2115 = vmatprep.subr.bf16.mxu0 %v2046
  %2116 = vmatpush1.bf16.msra.mxu0 %v2045
  %2117 = vmatprep.subr.bf16.mxu0 %v2050
  %2118 = vmatpush1.bf16.msra.mxu0 %v2049
  %2119 = vmatprep.subr.bf16.mxu0 %v2054
  %2120 = vmatpush1.bf16.msra.mxu0 %v2053
  %2121 = vmatprep.subr.bf16.mxu0 %v2058
  %2122 = vmatpush1.bf16.msra.mxu0 %v2057
  %2123 = vmatprep.subr.bf16.mxu0 %v2062
  %2124 = vmatpush1.bf16.msra.mxu0 %v2061
  %2125 = vmatprep.subr.bf16.mxu0 %v2066
  %2126 = vmatpush1.bf16.msra.mxu0 %v2065
  %2127 = vmatprep.subr.bf16.mxu0 0
  %2128 = vmatpush1.bf16.msra.mxu0 0
  %2129 = vmatprep.subr.bf16.mxu0 0
  %2130 = vmatpush1.bf16.msra.mxu0 0
  %2131 = vmatprep.subr.bf16.mxu0 0
  %2132 = vmatpush1.bf16.msra.mxu0 0
  %2133 = vmatprep.subr.bf16.mxu0 0
  %2134 = vmatpush1.bf16.msra.mxu0 0
  %2135 = vmatprep.subr.bf16.mxu0 0
  %2136 = vmatpush1.bf16.msra.mxu0 0
  %2137 = vmatprep.subr.bf16.mxu0 0
  %2138 = vmatpush1.bf16.msra.mxu0 0
  %2139 = vmatprep.subr.bf16.mxu0 0
  %2140 = vmatpush1.bf16.msra.mxu0 0
  %2141 = vmatprep.subr.bf16.mxu0 0
  %2142 = vmatpush1.bf16.msra.mxu0 0
  %2143 = vmatprep.mubr.bf16.mxu0 0
  %2144 = vmatmul.mubr.bf16.gmra.mrb[0].mxu0 %v2067
  %v2145 = vpop.f32.mrb[0].mxu0
  %v2146 = vadd.f32 %v2069, %v2145
  %v2147 = vpop.f32.mrb[0].mxu0
  %v2148 = vadd.f32 %v2069, %v2147
  %v2149 = vpop.f32.mrb[0].mxu0
  %v2150 = vpop.f32.mrb[0].mxu0
  %2151 = vdwg.mxu0
  %v2156 = vcombine.low %v2105, %v2107
  %v2157 = vcombine.low %v2146, %v2148
  %v2159 = vunpack.c.l.s4 1966171168
  %v2160 = vunpack.c.0.s8 %v2159
  %v2161 = vlaneseq
  %v2162 = vshrl.u32 %v2161, 7
  %v2163 = vsub.s32 %v2160, %v2162
  %v2164 = vrot.slane %v2156, %v2163
  %v2166 = vunpack.c.l.s4 1966171168
  %v2167 = vunpack.c.0.s8 %v2166
  %v2168 = vlaneseq
  %v2169 = vshrl.u32 %v2168, 7
  %v2170 = vsub.s32 %v2167, %v2169
  %v2171 = vrot.slane %v2157, %v2170
  %v2172 = vcombine.low %v2164, %v2171
  %v2174 = vunpack.c.l.s4 1966171168
  %v2175 = vunpack.c.0.s8 %v2174
  %v2176 = vlaneseq
  %v2177 = vshrl.u32 %v2176, 7
  %v2178 = vsub.s32 %v2175, %v2177
  %v2179 = vrot.slane %v2172, %v2178
  %v2181 = vlaneseq
  %vm2182 = vcmp.ge.s32.totalorder %v2181, 0
  %vm2183 = vcmp.lt.s32.totalorder %v2181, 512
  %vm2184 = vmand %vm2182, %vm2183
  %2185 = vst.msk [vmem:[%s7] sm:$0xf] %vm2184, %v2179
  // Predicated region
  $region30: #{mlp_forward.1} parent=0 // pred_check
    _
  $region31: #{mlp_forward.1} parent=0 // pred_check_branch
    %2187 = sbr.rel (0) target = $region33
  $region32: #{mlp_forward.1} parent=0 // pred_region
    _
  $region33: #{mlp_forward.1} parent=0 // pred_fallthru
    _
  // Predicated region
  $region34: #{mlp_forward.1} parent=0 // pred_check
    _
  $region35: #{mlp_forward.1} parent=0 // pred_check_branch
    %2189 = sbr.rel (0) target = $region37
  $region36: #{mlp_forward.1} parent=0 // pred_region
    _
  $region37: #{mlp_forward.1} parent=0 // pred_fallthru
    _

</llo_original>
